<compile_context>
chip_gen: v5e
topology: v5e:2x2
jax: 0.10.0
libtpu: 0.0.40
codegen_flags: <defaults>
</compile_context>

<pallas_src>
import jax
import jax.numpy as jnp
from jax.experimental import pallas as pl
from jax.experimental.pallas import tpu as pltpu


def conv_relu_kernel(x_ref, w_ref, b_ref, o_ref):
    # x_ref: (H+2, W+2, Cin)  bf16 — whole padded image, resident across row tiles
    # w_ref: (9, Cin, Cout)   bf16 — tap-major conv weight, resident
    # b_ref: (1, Cout)        f32  — bias, resident
    # o_ref: (Cout, TH*W)          — NCHW-flat output row tile (no lane padding)
    cout, thw = o_ref.shape
    wp2 = x_ref.shape[1]
    w = wp2 - 2
    th = thw // w

    t = pl.program_id(1)
    row0 = t * th
    if th % 8 == 0:
        row0 = pl.multiple_of(row0, 8)

    acc = jnp.zeros((thw, cout), jnp.float32)
    # 9 shifted tap matmuls, bf16 operands, f32 accumulation (all VMEM-local reads).
    for dh in range(3):
        for dw in range(3):
            xs = x_ref[pl.ds(row0 + dh, th), dw:dw + w, :]        # (TH, W, Cin)
            acc = acc + jnp.dot(xs.reshape(thw, x_ref.shape[-1]),
                                w_ref[dh * 3 + dw],
                                preferred_element_type=jnp.float32)

    acc = jnp.maximum(acc + b_ref[...], 0.0)                      # bias + ReLU, f32
    o_ref[...] = acc.T.astype(o_ref.dtype)                        # (Cout, TH*W)


def _tile_padded_bytes(shape, itemsize):
    """Approximate VMEM bytes of a block after (sublane, lane) layout padding."""
    if len(shape) < 2:
        return max(int(shape[0]) if shape else 1, 1) * itemsize
    sub_mult = 8 * max(4 // itemsize, 1)                          # 8 for f32, 16 for bf16
    sub = -(-shape[-2] // sub_mult) * sub_mult
    lane = -(-shape[-1] // 128) * 128
    lead = 1
    for d in shape[:-2]:
        lead *= int(d)
    return lead * sub * lane * itemsize


def conv_relu(x_nchw, weight_oihw, bias):
    """ConvRelu forward. x_nchw: (N, Cin, H, W); weight_oihw: (Cout, Cin, 3, 3)."""
    N, Cin, H, W = x_nchw.shape
    Cout = weight_oihw.shape[0]
    out_dtype = x_nchw.dtype

    # ---- layout prep in the wrapper (one HBM pass over the activation) ------
    # Cast to bf16 BEFORE padding so the padded intermediate is half-size.
    x_nhwc = jnp.transpose(x_nchw, (0, 2, 3, 1)).astype(jnp.bfloat16)
    x_pad = jnp.pad(x_nhwc, ((0, 0), (1, 1), (1, 1), (0, 0)))      # (N, H+2, W+2, Cin)

    # (Cout, Cin, kh, kw) -> (kh, kw, Cin, Cout) -> (9, Cin, Cout); tap j = dh*3+dw
    w9 = jnp.transpose(weight_oihw, (2, 3, 1, 0)).reshape(9, Cin, Cout)
    w9 = w9.astype(jnp.bfloat16)
    b2 = bias.astype(jnp.float32).reshape(1, Cout)

    # Row tile: TH=8 keeps the output block's lane dim (TH*W) a multiple of 128
    # and gives H/8 grid steps per image; fall back to full-H when shapes are odd.
    if H % 8 == 0 and (8 * W) % 128 == 0:
        TH = 8
    else:
        TH = H
    HT = H // TH
    grid = (N, HT)

    # ---- VMEM budget from actual block sizes (per-generation cap) -----------
    out_itemsize = jnp.dtype(out_dtype).itemsize
    need = 2 * (  # x2 for double-buffering
        _tile_padded_bytes((H + 2, W + 2, Cin), 2)
        + _tile_padded_bytes((9, Cin, Cout), 2)
        + _tile_padded_bytes((1, Cout), 4)
        + _tile_padded_bytes((Cout, TH * W), out_itemsize)
    )
    try:
        phys_vmem = pltpu.get_tpu_info().vmem_capacity_bytes
    except Exception:
        phys_vmem = 64 * 1024 * 1024                               # v7x-conservative
    vmem_limit = int(min(phys_vmem * 3 // 4,
                         max(16 * 1024 * 1024, need + 4 * 1024 * 1024)))

    out_flat = pl.pallas_call(
        conv_relu_kernel,
        out_shape=jax.ShapeDtypeStruct((N, Cout, H * W), out_dtype),
        grid_spec=pltpu.PrefetchScalarGridSpec(
            num_scalar_prefetch=0,
            grid=grid,
            in_specs=[
                # Whole padded image; index_map constant in t => fetched once per image.
                pl.BlockSpec((None, H + 2, W + 2, Cin), lambda n, t: (n, 0, 0, 0)),
                pl.BlockSpec((9, Cin, Cout), lambda n, t: (0, 0, 0)),   # resident weight
                pl.BlockSpec((1, Cout), lambda n, t: (0, 0)),           # resident bias
            ],
            out_specs=pl.BlockSpec((None, Cout, TH * W), lambda n, t: (n, 0, t)),
        ),
        compiler_params=pltpu.CompilerParams(
            dimension_semantics=("parallel", "parallel"),
            vmem_limit_bytes=vmem_limit,
        ),
    )(x_pad, w9, b2)

    # Free reshape (contiguous split) — output is already NCHW, no transpose pass.
    return out_flat.reshape(N, Cout, H, W)


if __name__ == "__main__":
    key = jax.random.PRNGKey(0)
    k_x, k_w, k_b = jax.random.split(key, 3)

    N, Cin, Cout, H, W = 2, 4, 8, 16, 16

    x = jax.random.normal(k_x, (N, Cin, H, W), dtype=jnp.float32)
    # Deterministic synthetic params (shapes per nn.Conv2d(in_, out, 3, padding=1))
    weight = jax.random.normal(k_w, (Cout, Cin, 3, 3), dtype=jnp.float32) * 0.1
    bias = jax.random.normal(k_b, (Cout,), dtype=jnp.float32) * 0.1

    out = conv_relu(x, weight, bias)
    out = jax.block_until_ready(out)

    # Reference: XLA conv + bias + ReLU in f32. Kernel uses bf16 operands with
    # f32 accumulation, so compare at bf16-appropriate tolerance (documented
    # precision contract).
    ref = jax.lax.conv_general_dilated(
        x, weight, window_strides=(1, 1), padding="SAME",
        dimension_numbers=("NCHW", "OIHW", "NCHW"),
    ) + bias[None, :, None, None]
    ref = jnp.maximum(ref, 0.0)

    assert out.shape == (N, Cout, H, W)
    assert jnp.allclose(out, ref, atol=2e-2, rtol=2e-2), (
        float(jnp.max(jnp.abs(out - ref)))
    )

    print("KERNEL_OK")
</pallas_src>

<mosaic_0001>
module attributes {stable_mosaic.version = 11 : i64} {
  func.func @conv_relu_kernel(%arg0: i32, %arg1: i32, %arg2: memref<1x18x18x4xbf16, #tpu.memory_space<vmem>>, %arg3: memref<9x4x8xbf16, #tpu.memory_space<vmem>>, %arg4: memref<1x8xf32, #tpu.memory_space<vmem>>, %arg5: memref<1x8x128xf32, #tpu.memory_space<vmem>>) attributes {dimension_semantics = [#tpu.dimension_semantics<parallel>, #tpu.dimension_semantics<parallel>], iteration_bounds = array<i64: 2, 2>, scalar_prefetch = 0 : i64, scratch_operands = 0 : i64, tpu.core_type = #tpu.core_type<tc>, window_params = [{transform_indices = @transform_0, window_bounds = array<i64: 1, 18, 18, 4>}, {pipeline_mode = #tpu.pipeline_mode<synchronous>, transform_indices = @transform_1, window_bounds = array<i64: 9, 4, 8>}, {pipeline_mode = #tpu.pipeline_mode<synchronous>, transform_indices = @transform_2, window_bounds = array<i64: 1, 8>}, {transform_indices = @transform_3, window_bounds = array<i64: 1, 8, 128>}]} {
    %c8_i32 = arith.constant 8 : i32
    %0 = arith.muli %arg1, %c8_i32 : i32
    %1 = tpu.assume_multiple %0, 8 : i32
    %cst = arith.constant 0.000000e+00 : f32
    %2 = vector.broadcast %cst : f32 to vector<128x8xf32>
    %c0_i32 = arith.constant 0 : i32
    %3 = arith.addi %1, %c0_i32 : i32
    %c0 = arith.constant 0 : index
    %4 = arith.index_cast %3 : i32 to index
    %c0_0 = arith.constant 0 : index
    %c0_1 = arith.constant 0 : index
    %5 = vector.load %arg2[%c0, %4, %c0_0, %c0_1] : memref<1x18x18x4xbf16, #tpu.memory_space<vmem>>, vector<1x8x16x4xbf16>
    %6 = vector.shape_cast %5 : vector<1x8x16x4xbf16> to vector<8x16x4xbf16>
    %7 = vector.shape_cast %6 : vector<8x16x4xbf16> to vector<128x4xbf16>
    %c0_2 = arith.constant 0 : index
    %c0_3 = arith.constant 0 : index
    %c0_4 = arith.constant 0 : index
    %8 = vector.load %arg3[%c0_2, %c0_3, %c0_4] : memref<9x4x8xbf16, #tpu.memory_space<vmem>>, vector<1x4x8xbf16>
    %9 = vector.shape_cast %8 : vector<1x4x8xbf16> to vector<4x8xbf16>
    %cst_5 = arith.constant dense<0.000000e+00> : vector<128x8xf32>
    %10 = tpu.matmul %7, %9, %cst_5 {dimension_numbers = #tpu.dot_dimension_numbers<[1], [0], [0], [1], [0, 0, 1, 1], [], []>} : vector<128x4xbf16>, vector<4x8xbf16>, vector<128x8xf32> -> vector<128x8xf32>
    %11 = arith.addf %2, %10 : vector<128x8xf32>
    %c0_i32_6 = arith.constant 0 : i32
    %12 = arith.addi %1, %c0_i32_6 : i32
    %c0_7 = arith.constant 0 : index
    %13 = arith.index_cast %12 : i32 to index
    %c1 = arith.constant 1 : index
    %c0_8 = arith.constant 0 : index
    %14 = vector.load %arg2[%c0_7, %13, %c1, %c0_8] : memref<1x18x18x4xbf16, #tpu.memory_space<vmem>>, vector<1x8x16x4xbf16>
    %15 = vector.shape_cast %14 : vector<1x8x16x4xbf16> to vector<8x16x4xbf16>
    %16 = vector.shape_cast %15 : vector<8x16x4xbf16> to vector<128x4xbf16>
    %c1_9 = arith.constant 1 : index
    %c0_10 = arith.constant 0 : index
    %c0_11 = arith.constant 0 : index
    %17 = vector.load %arg3[%c1_9, %c0_10, %c0_11] : memref<9x4x8xbf16, #tpu.memory_space<vmem>>, vector<1x4x8xbf16>
    %18 = vector.shape_cast %17 : vector<1x4x8xbf16> to vector<4x8xbf16>
    %cst_12 = arith.constant dense<0.000000e+00> : vector<128x8xf32>
    %19 = tpu.matmul %16, %18, %cst_12 {dimension_numbers = #tpu.dot_dimension_numbers<[1], [0], [0], [1], [0, 0, 1, 1], [], []>} : vector<128x4xbf16>, vector<4x8xbf16>, vector<128x8xf32> -> vector<128x8xf32>
    %20 = arith.addf %11, %19 : vector<128x8xf32>
    %c0_i32_13 = arith.constant 0 : i32
    %21 = arith.addi %1, %c0_i32_13 : i32
    %c0_14 = arith.constant 0 : index
    %22 = arith.index_cast %21 : i32 to index
    %c2 = arith.constant 2 : index
    %c0_15 = arith.constant 0 : index
    %23 = vector.load %arg2[%c0_14, %22, %c2, %c0_15] : memref<1x18x18x4xbf16, #tpu.memory_space<vmem>>, vector<1x8x16x4xbf16>
    %24 = vector.shape_cast %23 : vector<1x8x16x4xbf16> to vector<8x16x4xbf16>
    %25 = vector.shape_cast %24 : vector<8x16x4xbf16> to vector<128x4xbf16>
    %c2_16 = arith.constant 2 : index
    %c0_17 = arith.constant 0 : index
    %c0_18 = arith.constant 0 : index
    %26 = vector.load %arg3[%c2_16, %c0_17, %c0_18] : memref<9x4x8xbf16, #tpu.memory_space<vmem>>, vector<1x4x8xbf16>
    %27 = vector.shape_cast %26 : vector<1x4x8xbf16> to vector<4x8xbf16>
    %cst_19 = arith.constant dense<0.000000e+00> : vector<128x8xf32>
    %28 = tpu.matmul %25, %27, %cst_19 {dimension_numbers = #tpu.dot_dimension_numbers<[1], [0], [0], [1], [0, 0, 1, 1], [], []>} : vector<128x4xbf16>, vector<4x8xbf16>, vector<128x8xf32> -> vector<128x8xf32>
    %29 = arith.addf %20, %28 : vector<128x8xf32>
    %c1_i32 = arith.constant 1 : i32
    %30 = arith.addi %1, %c1_i32 : i32
    %c0_20 = arith.constant 0 : index
    %31 = arith.index_cast %30 : i32 to index
    %c0_21 = arith.constant 0 : index
    %c0_22 = arith.constant 0 : index
    %32 = vector.load %arg2[%c0_20, %31, %c0_21, %c0_22] : memref<1x18x18x4xbf16, #tpu.memory_space<vmem>>, vector<1x8x16x4xbf16>
    %33 = vector.shape_cast %32 : vector<1x8x16x4xbf16> to vector<8x16x4xbf16>
    %34 = vector.shape_cast %33 : vector<8x16x4xbf16> to vector<128x4xbf16>
    %c3 = arith.constant 3 : index
    %c0_23 = arith.constant 0 : index
    %c0_24 = arith.constant 0 : index
    %35 = vector.load %arg3[%c3, %c0_23, %c0_24] : memref<9x4x8xbf16, #tpu.memory_space<vmem>>, vector<1x4x8xbf16>
    %36 = vector.shape_cast %35 : vector<1x4x8xbf16> to vector<4x8xbf16>
    %cst_25 = arith.constant dense<0.000000e+00> : vector<128x8xf32>
    %37 = tpu.matmul %34, %36, %cst_25 {dimension_numbers = #tpu.dot_dimension_numbers<[1], [0], [0], [1], [0, 0, 1, 1], [], []>} : vector<128x4xbf16>, vector<4x8xbf16>, vector<128x8xf32> -> vector<128x8xf32>
    %38 = arith.addf %29, %37 : vector<128x8xf32>
    %c1_i32_26 = arith.constant 1 : i32
    %39 = arith.addi %1, %c1_i32_26 : i32
    %c0_27 = arith.constant 0 : index
    %40 = arith.index_cast %39 : i32 to index
    %c1_28 = arith.constant 1 : index
    %c0_29 = arith.constant 0 : index
    %41 = vector.load %arg2[%c0_27, %40, %c1_28, %c0_29] : memref<1x18x18x4xbf16, #tpu.memory_space<vmem>>, vector<1x8x16x4xbf16>
    %42 = vector.shape_cast %41 : vector<1x8x16x4xbf16> to vector<8x16x4xbf16>
    %43 = vector.shape_cast %42 : vector<8x16x4xbf16> to vector<128x4xbf16>
    %c4 = arith.constant 4 : index
    %c0_30 = arith.constant 0 : index
    %c0_31 = arith.constant 0 : index
    %44 = vector.load %arg3[%c4, %c0_30, %c0_31] : memref<9x4x8xbf16, #tpu.memory_space<vmem>>, vector<1x4x8xbf16>
    %45 = vector.shape_cast %44 : vector<1x4x8xbf16> to vector<4x8xbf16>
    %cst_32 = arith.constant dense<0.000000e+00> : vector<128x8xf32>
    %46 = tpu.matmul %43, %45, %cst_32 {dimension_numbers = #tpu.dot_dimension_numbers<[1], [0], [0], [1], [0, 0, 1, 1], [], []>} : vector<128x4xbf16>, vector<4x8xbf16>, vector<128x8xf32> -> vector<128x8xf32>
    %47 = arith.addf %38, %46 : vector<128x8xf32>
    %c1_i32_33 = arith.constant 1 : i32
    %48 = arith.addi %1, %c1_i32_33 : i32
    %c0_34 = arith.constant 0 : index
    %49 = arith.index_cast %48 : i32 to index
    %c2_35 = arith.constant 2 : index
    %c0_36 = arith.constant 0 : index
    %50 = vector.load %arg2[%c0_34, %49, %c2_35, %c0_36] : memref<1x18x18x4xbf16, #tpu.memory_space<vmem>>, vector<1x8x16x4xbf16>
    %51 = vector.shape_cast %50 : vector<1x8x16x4xbf16> to vector<8x16x4xbf16>
    %52 = vector.shape_cast %51 : vector<8x16x4xbf16> to vector<128x4xbf16>
    %c5 = arith.constant 5 : index
    %c0_37 = arith.constant 0 : index
    %c0_38 = arith.constant 0 : index
    %53 = vector.load %arg3[%c5, %c0_37, %c0_38] : memref<9x4x8xbf16, #tpu.memory_space<vmem>>, vector<1x4x8xbf16>
    %54 = vector.shape_cast %53 : vector<1x4x8xbf16> to vector<4x8xbf16>
    %cst_39 = arith.constant dense<0.000000e+00> : vector<128x8xf32>
    %55 = tpu.matmul %52, %54, %cst_39 {dimension_numbers = #tpu.dot_dimension_numbers<[1], [0], [0], [1], [0, 0, 1, 1], [], []>} : vector<128x4xbf16>, vector<4x8xbf16>, vector<128x8xf32> -> vector<128x8xf32>
    %56 = arith.addf %47, %55 : vector<128x8xf32>
    %c2_i32 = arith.constant 2 : i32
    %57 = arith.addi %1, %c2_i32 : i32
    %c0_40 = arith.constant 0 : index
    %58 = arith.index_cast %57 : i32 to index
    %c0_41 = arith.constant 0 : index
    %c0_42 = arith.constant 0 : index
    %59 = vector.load %arg2[%c0_40, %58, %c0_41, %c0_42] : memref<1x18x18x4xbf16, #tpu.memory_space<vmem>>, vector<1x8x16x4xbf16>
    %60 = vector.shape_cast %59 : vector<1x8x16x4xbf16> to vector<8x16x4xbf16>
    %61 = vector.shape_cast %60 : vector<8x16x4xbf16> to vector<128x4xbf16>
    %c6 = arith.constant 6 : index
    %c0_43 = arith.constant 0 : index
    %c0_44 = arith.constant 0 : index
    %62 = vector.load %arg3[%c6, %c0_43, %c0_44] : memref<9x4x8xbf16, #tpu.memory_space<vmem>>, vector<1x4x8xbf16>
    %63 = vector.shape_cast %62 : vector<1x4x8xbf16> to vector<4x8xbf16>
    %cst_45 = arith.constant dense<0.000000e+00> : vector<128x8xf32>
    %64 = tpu.matmul %61, %63, %cst_45 {dimension_numbers = #tpu.dot_dimension_numbers<[1], [0], [0], [1], [0, 0, 1, 1], [], []>} : vector<128x4xbf16>, vector<4x8xbf16>, vector<128x8xf32> -> vector<128x8xf32>
    %65 = arith.addf %56, %64 : vector<128x8xf32>
    %c2_i32_46 = arith.constant 2 : i32
    %66 = arith.addi %1, %c2_i32_46 : i32
    %c0_47 = arith.constant 0 : index
    %67 = arith.index_cast %66 : i32 to index
    %c1_48 = arith.constant 1 : index
    %c0_49 = arith.constant 0 : index
    %68 = vector.load %arg2[%c0_47, %67, %c1_48, %c0_49] : memref<1x18x18x4xbf16, #tpu.memory_space<vmem>>, vector<1x8x16x4xbf16>
    %69 = vector.shape_cast %68 : vector<1x8x16x4xbf16> to vector<8x16x4xbf16>
    %70 = vector.shape_cast %69 : vector<8x16x4xbf16> to vector<128x4xbf16>
    %c7 = arith.constant 7 : index
    %c0_50 = arith.constant 0 : index
    %c0_51 = arith.constant 0 : index
    %71 = vector.load %arg3[%c7, %c0_50, %c0_51] : memref<9x4x8xbf16, #tpu.memory_space<vmem>>, vector<1x4x8xbf16>
    %72 = vector.shape_cast %71 : vector<1x4x8xbf16> to vector<4x8xbf16>
    %cst_52 = arith.constant dense<0.000000e+00> : vector<128x8xf32>
    %73 = tpu.matmul %70, %72, %cst_52 {dimension_numbers = #tpu.dot_dimension_numbers<[1], [0], [0], [1], [0, 0, 1, 1], [], []>} : vector<128x4xbf16>, vector<4x8xbf16>, vector<128x8xf32> -> vector<128x8xf32>
    %74 = arith.addf %65, %73 : vector<128x8xf32>
    %c2_i32_53 = arith.constant 2 : i32
    %75 = arith.addi %1, %c2_i32_53 : i32
    %c0_54 = arith.constant 0 : index
    %76 = arith.index_cast %75 : i32 to index
    %c2_55 = arith.constant 2 : index
    %c0_56 = arith.constant 0 : index
    %77 = vector.load %arg2[%c0_54, %76, %c2_55, %c0_56] : memref<1x18x18x4xbf16, #tpu.memory_space<vmem>>, vector<1x8x16x4xbf16>
    %78 = vector.shape_cast %77 : vector<1x8x16x4xbf16> to vector<8x16x4xbf16>
    %79 = vector.shape_cast %78 : vector<8x16x4xbf16> to vector<128x4xbf16>
    %c8 = arith.constant 8 : index
    %c0_57 = arith.constant 0 : index
    %c0_58 = arith.constant 0 : index
    %80 = vector.load %arg3[%c8, %c0_57, %c0_58] : memref<9x4x8xbf16, #tpu.memory_space<vmem>>, vector<1x4x8xbf16>
    %81 = vector.shape_cast %80 : vector<1x4x8xbf16> to vector<4x8xbf16>
    %cst_59 = arith.constant dense<0.000000e+00> : vector<128x8xf32>
    %82 = tpu.matmul %79, %81, %cst_59 {dimension_numbers = #tpu.dot_dimension_numbers<[1], [0], [0], [1], [0, 0, 1, 1], [], []>} : vector<128x4xbf16>, vector<4x8xbf16>, vector<128x8xf32> -> vector<128x8xf32>
    %83 = arith.addf %74, %82 : vector<128x8xf32>
    %c0_60 = arith.constant 0 : index
    %c0_61 = arith.constant 0 : index
    %84 = vector.load %arg4[%c0_60, %c0_61] : memref<1x8xf32, #tpu.memory_space<vmem>>, vector<1x8xf32>
    %85 = vector.broadcast %84 : vector<1x8xf32> to vector<128x8xf32>
    %86 = arith.addf %83, %85 : vector<128x8xf32>
    %cst_62 = arith.constant 0.000000e+00 : f32
    %87 = vector.broadcast %cst_62 : f32 to vector<128x8xf32>
    %88 = arith.maximumf %86, %87 : vector<128x8xf32>
    %89 = tpu.transpose %88, [1, 0] : vector<128x8xf32> -> vector<8x128xf32>
    %c0_63 = arith.constant 0 : index
    %c0_64 = arith.constant 0 : index
    %c0_65 = arith.constant 0 : index
    %90 = vector.load %arg5[%c0_63, %c0_64, %c0_65] : memref<1x8x128xf32, #tpu.memory_space<vmem>>, vector<1x8x128xf32>
    %91 = vector.shape_cast %90 : vector<1x8x128xf32> to vector<8x128xf32>
    %92 = vector.shape_cast %89 : vector<8x128xf32> to vector<1x8x128xf32>
    tpu.vector_store %arg5[%c0_63, %c0_64, %c0_65], %92 {strides = array<i32>} : memref<1x8x128xf32, #tpu.memory_space<vmem>>, vector<1x8x128xf32>,
    return
  }
  func.func @transform_0(%arg0: i32, %arg1: i32) -> (i32, i32, i32, i32) {
    %c0_i32 = arith.constant 0 : i32
    %c0_i32_0 = arith.constant 0 : i32
    %c0_i32_1 = arith.constant 0 : i32
    %c0_i32_2 = arith.constant 0 : i32
    return %arg0, %c0_i32, %c0_i32_0, %c0_i32_1 : i32, i32, i32, i32
  }
  func.func @transform_1(%arg0: i32, %arg1: i32) -> (i32, i32, i32) {
    %c0_i32 = arith.constant 0 : i32
    %c0_i32_0 = arith.constant 0 : i32
    %c0_i32_1 = arith.constant 0 : i32
    %c0_i32_2 = arith.constant 0 : i32
    return %c0_i32, %c0_i32_0, %c0_i32_1 : i32, i32, i32
  }
  func.func @transform_2(%arg0: i32, %arg1: i32) -> (i32, i32) {
    %c0_i32 = arith.constant 0 : i32
    %c0_i32_0 = arith.constant 0 : i32
    %c0_i32_1 = arith.constant 0 : i32
    return %c0_i32, %c0_i32_0 : i32, i32
  }
  func.func @transform_3(%arg0: i32, %arg1: i32) -> (i32, i32, i32) {
    %c0_i32 = arith.constant 0 : i32
    %c0_i32_0 = arith.constant 0 : i32
    return %arg0, %c0_i32, %arg1 : i32, i32, i32
  }
}

</mosaic_0001>

<llo_original>
// kernel: tpu_custom_call.1
$region0: #{tpu_custom_call.1}
  #allocation0 [shape = 'u32[]', space=smem, size = 0x4, offset = 0x4, fixed_abs, tag = 'smem constant byte address 0x4 - core index']
  #allocation1 [shape = 'u32[72,128]{1,0:T(1,128)}', space=vmem, size = 0x9000, scoped, tag = 'internal scratch']
  %s0 = inlined_call_operand.vmem [shape: bf16[2,18,18,4], index: 0, kind: input, shape index: {}]
  %s1 = inlined_call_operand.vmem [shape: bf16[9,4,8], index: 1, kind: input, shape index: {}]
  %s2 = inlined_call_operand.vmem [shape: f32[1,8], index: 2, kind: input, shape index: {}]
  %s3 = inlined_call_operand.hbm [shape: f32[2,8,256], index: 3, kind: output, shape index: {}]
  %s4 = sld [smem:[#allocation0]]
  $region45: #{tpu_custom_call.1} parent=0
    _
  %s6 = ssub.s32 1, %s4
  %s7 = scalar_select 0, %s6, %s4
  $region1: #{tpu_custom_call.1} parent=0
    #allocation2 [shape = 'u8[8192]{0}', space=vmem, size = 0x2000, scoped, tag = 'output window, operand 0']
    #allocation3 [shape = 's32[2]{0}', space=sflag, size = 0x8, scoped, tag = 'scoped memory for tpu_custom_call.1']
    %8 = vsyncpa [#allocation3], 0
    %s9 = scalar_lea.sflag [#allocation3], 1
    %10 = vsyncpa %s9, 0
    loop: start=0, step=1, limit=6
    $region2: #{tpu_custom_call.1} parent=1 // loop_pre_header
      _
    $region3: #{tpu_custom_call.1} parent=1 // loop_header
      %s12 = sphi 0, %s16
      %p13 = scmp.ge.s32.totalorder %s12, 6
      %s19 = sphi 0, %s31
      %s20 = sphi 0, %s27
      %s21 = sphi 0, %s19
      %s22 = sphi 0, %s20
      %s23 = sphi 0, %s21
      %s24 = sphi 0, %s22
      %s34 = sphi 0, %s36
      %s37 = sphi 0, %s34
      %s38 = sphi 0, %s37
      %s54 = sphi 0, %s38
      %s58 = sphi 0, %s58
      %s60 = sphi 0, %s58
      %s61 = sphi 0, %s60
      %s75 = sphi 0, %s61
      %s79 = sphi 0, %s79
      %s81 = sphi 0, %s79
      %s82 = sphi 0, %s81
      %s96 = sphi 0, %s82
      %s104 = sphi 0, %s106
      %s107 = sphi 0, %s104
      %s108 = sphi 0, %s107
      %s124 = sphi 0, %s108
    $region4: #{tpu_custom_call.1} parent=1 // loop_header_branch
      %15 = sbr.rel (%p13) target = $region8
    $region5: #{tpu_custom_call.1} parent=1 // loop_body
      %s17 = ssub.s32 %s12, 1
      %s18 = ssub.s32 %s12, 2
      %s25 = sadd.s32 1, %s20
      %p26 = scmp.ge.s32.totalorder %s25, 2
      %s27 = scalar_select %p26, 0, %s25
      %s28 = sadd.s32 1, %s19
      %s29 = scalar_select %p26, %s28, %s19
      %p30 = scmp.ge.s32.totalorder %s29, 2
      %s31 = scalar_select %p30, 0, %s29
      %s32 = ssub.s32 %s19, %s31
      %p33 = scmp.eq.s32.totalorder %s32, 0
      %s35 = sadd.s32 %s34, 1
      %s36 = scalar_select %p33, %s34, %s35
      %p39 = pneg %p33
      %p40 = scmp.eq.s32.totalorder %s12, 3
      %p41 = por %p39, %p40
      %p42 = scmp.ne.s32.totalorder %s34, %s37
      %p43 = scmp.eq.s32.totalorder %s12, 0
      %p44 = por %p42, %p43
      %p45 = scmp.ne.s32.totalorder %s34, %s37
      %p46 = scmp.eq.s32.totalorder %s17, 3
      %p47 = por %p45, %p46
      %p48 = scmp.ne.s32.totalorder %s37, %s38
      %p49 = scmp.eq.s32.totalorder %s17, 0
      %p50 = por %p48, %p49
      %p51 = scmp.ne.s32.totalorder %s37, %s38
      %p52 = scmp.eq.s32.totalorder %s18, 3
      %p53 = por %p51, %p52
      %p55 = scmp.ne.s32.totalorder %s38, %s54
      %p56 = scmp.eq.s32.totalorder %s18, 0
      %p57 = por %p55, %p56
      %s59 = sadd.s32 %s58, 1
      %p62 = scmp.eq.s32.totalorder %s12, 3
      %p63 = scmp.ne.s32.totalorder %s58, %s60
      %p64 = scmp.eq.s32.totalorder %s12, 0
      %p65 = por %p63, %p64
      %p66 = scmp.ne.s32.totalorder %s58, %s60
      %p67 = scmp.eq.s32.totalorder %s17, 3
      %p68 = por %p66, %p67
      %p69 = scmp.ne.s32.totalorder %s60, %s61
      %p70 = scmp.eq.s32.totalorder %s17, 0
      %p71 = por %p69, %p70
      %p72 = scmp.ne.s32.totalorder %s60, %s61
      %p73 = scmp.eq.s32.totalorder %s18, 3
      %p74 = por %p72, %p73
      %p76 = scmp.ne.s32.totalorder %s61, %s75
      %p77 = scmp.eq.s32.totalorder %s18, 0
      %p78 = por %p76, %p77
      %s80 = sadd.s32 %s79, 1
      %p83 = scmp.eq.s32.totalorder %s12, 3
      %p84 = scmp.ne.s32.totalorder %s79, %s81
      %p85 = scmp.eq.s32.totalorder %s12, 0
      %p86 = por %p84, %p85
      %p87 = scmp.ne.s32.totalorder %s79, %s81
      %p88 = scmp.eq.s32.totalorder %s17, 3
      %p89 = por %p87, %p88
      %p90 = scmp.ne.s32.totalorder %s81, %s82
      %p91 = scmp.eq.s32.totalorder %s17, 0
      %p92 = por %p90, %p91
      %p93 = scmp.ne.s32.totalorder %s81, %s82
      %p94 = scmp.eq.s32.totalorder %s18, 3
      %p95 = por %p93, %p94
      %p97 = scmp.ne.s32.totalorder %s82, %s96
      %p98 = scmp.eq.s32.totalorder %s18, 0
      %p99 = por %p97, %p98
      %s100 = ssub.s32 %s19, %s31
      %s101 = ssub.s32 %s20, %s27
      %s102 = sor.u32 %s100, %s101
      %p103 = scmp.eq.s32.totalorder %s102, 0
      %s105 = sadd.s32 %s104, 1
      %s106 = scalar_select %p103, %s104, %s105
      %p109 = pneg %p103
      %p110 = scmp.eq.s32.totalorder %s12, 3
      %p111 = por %p109, %p110
      %p112 = scmp.ne.s32.totalorder %s104, %s107
      %p113 = scmp.eq.s32.totalorder %s12, 0
      %p114 = por %p112, %p113
      %p115 = scmp.ne.s32.totalorder %s104, %s107
      %p116 = scmp.eq.s32.totalorder %s17, 3
      %p117 = por %p115, %p116
      %p118 = scmp.ne.s32.totalorder %s107, %s108
      %p119 = scmp.eq.s32.totalorder %s17, 0
      %p120 = por %p118, %p119
      %p121 = scmp.ne.s32.totalorder %s107, %s108
      %p122 = scmp.eq.s32.totalorder %s18, 3
      %p123 = por %p121, %p122
      %p125 = scmp.ne.s32.totalorder %s108, %s124
      %p126 = scmp.eq.s32.totalorder %s18, 0
      %p127 = por %p125, %p126
      %p128 = scmp.le.s32.totalorder 1, %s12
      %p129 = scmp.lt.s32.totalorder %s12, 5
      %p130 = pnand %p128, %p129
      %p131 = pneg %p130
      // Predicated region
      $region9: #{tpu_custom_call.1} parent=5 // pred_check
        _
      $region10: #{tpu_custom_call.1} parent=5 // pred_check_branch
        %133 = sbr.rel (%p130) target = $region12
      $region11: #{tpu_custom_call.1} parent=5 // pred_region
        %s134 = ssub.s32 %s12, 1
        // Predicated region
        $region13: #{tpu_custom_call.1} parent=11 // pred_check
          %p135 = pneg %p71
        $region14: #{tpu_custom_call.1} parent=11 // pred_check_branch
          %137 = sbr.rel (%p135) target = $region16
        $region15: #{tpu_custom_call.1} parent=11 // pred_region
          _
        $region16: #{tpu_custom_call.1} parent=11 // pred_fallthru
          _
        // Predicated region
        $region17: #{tpu_custom_call.1} parent=11 // pred_check
          %p138 = pneg %p92
        $region18: #{tpu_custom_call.1} parent=11 // pred_check_branch
          %140 = sbr.rel (%p138) target = $region20
        $region19: #{tpu_custom_call.1} parent=11 // pred_region
          _
        $region20: #{tpu_custom_call.1} parent=11 // pred_fallthru
          _
      $region12: #{tpu_custom_call.1} parent=5 // pred_fallthru
        _
      %p141 = scmp.lt.s32.totalorder %s12, 4
      // Predicated region
      $region21: #{tpu_custom_call.1} parent=5 // pred_check
        %p142 = pneg %p141
      $region22: #{tpu_custom_call.1} parent=5 // pred_check_branch
        %144 = sbr.rel (%p142) target = $region24
      $region23: #{tpu_custom_call.1} parent=5 // pred_region
        // Predicated region
        $region25: #{tpu_custom_call.1} parent=23 // pred_check
          %p145 = pneg %p44
        $region26: #{tpu_custom_call.1} parent=23 // pred_check_branch
          %147 = sbr.rel (%p145) target = $region28
        $region27: #{tpu_custom_call.1} parent=23 // pred_region
          %p148 = scmp.lt.s32.totalorder %s19, 1
          %s149 = scalar_select %p148, %s19, 1
          %s150 = smul.addr %s149, 54
          %s151 = smul.addr %s150, 4
          %s152 = scalar_lea.vmem %s0, %s151
        $region28: #{tpu_custom_call.1} parent=23 // pred_fallthru
          _
      $region24: #{tpu_custom_call.1} parent=5 // pred_fallthru
        _
      %p153 = scmp.le.s32.totalorder 1, %s12
      %p154 = scmp.lt.s32.totalorder %s12, 5
      %p155 = pnand %p153, %p154
      %p156 = pneg %p155
      // Predicated region
      $region29: #{tpu_custom_call.1} parent=5 // pred_check
        _
      $region30: #{tpu_custom_call.1} parent=5 // pred_check_branch
        %158 = sbr.rel (%p155) target = $region32
      $region31: #{tpu_custom_call.1} parent=5 // pred_region
        %s159 = ssub.s32 %s12, 1
        %p160 = scmp.lt.s32.totalorder %s21, 1
        %s161 = scalar_select %p160, %s21, 1
        %s162 = smul.addr %s161, 54
        %s163 = smul.addr %s162, 4
        %s164 = scalar_lea.vmem %s0, %s163
        %p165 = pneg %p50
        %p166 = pneg %p47
        %p167 = pneg %p71
        %p168 = pneg %p68
        %p169 = pneg %p92
        %p170 = pneg %p89
        %p171 = pneg %p120
        %p172 = pneg %p117
        %s173 = sand.u32 %s107, 1
        %s174 = scalar_lea.sflag [#allocation3], %s173
        %s175 = sand.u32 %s107, 1
        %s176 = smul.addr %s175, 8
        %s177 = scalar_lea.vmem [#allocation2], %s176
        %p178 = scmp.lt.s32.totalorder %s21, 1
        %s179 = scalar_select %p178, %s21, 1
        %s180 = smul.addr %s179, 54
        %s181 = smul.addr %s180, 4
        %s182 = scalar_lea.vmem %s0, %s181
        %s184 = smul.u32 %s22, 8
        %s185 = smul.u32 %s184, 3
        %s186 = smul.addr %s185, 4
        %s187 = scalar_lea.vmem %s182, %s186
        %v188 = vld [vmem:[%s187] sm:$0xf]
        %v189 = vld [vmem:[%s187 + $0x4] sm:$0xf]
        %v190 = vld [vmem:[%s187 + $0xc] sm:$0xf]
        %v191 = vld [vmem:[%s187 + $0x10] sm:$0xf]
        %v192 = vld [vmem:[%s187 + $0x18] sm:$0xf]
        %v193 = vld [vmem:[%s187 + $0x1c] sm:$0xf]
        %v194 = vld [vmem:[%s187 + $0x24] sm:$0xf]
        %v195 = vld [vmem:[%s187 + $0x28] sm:$0xf]
        %v196 = vld [vmem:[%s187 + $0x30] sm:$0xf]
        %v197 = vld [vmem:[%s187 + $0x34] sm:$0xf]
        %v198 = vld [vmem:[%s187 + $0x3c] sm:$0xf]
        %v199 = vld [vmem:[%s187 + $0x40] sm:$0xf]
        %v200 = vld [vmem:[%s187 + $0x48] sm:$0xf]
        %v201 = vld [vmem:[%s187 + $0x4c] sm:$0xf]
        %v202 = vld [vmem:[%s187 + $0x54] sm:$0xf]
        %v203 = vld [vmem:[%s187 + $0x58] sm:$0xf]
        %v204 = vld [vmem:[%s1] sm:$0x3]
        %v205 = vld [vmem:[%s187 + $0x8] sm:$0x1]
        %v206 = vld [vmem:[%s187 + $0x14] sm:$0x1]
        %v207 = vld [vmem:[%s187 + $0x20] sm:$0x1]
        %v208 = vld [vmem:[%s187 + $0x2c] sm:$0x1]
        %v209 = vld [vmem:[%s187 + $0x38] sm:$0x1]
        %v210 = vld [vmem:[%s187 + $0x44] sm:$0x1]
        %v211 = vld [vmem:[%s187 + $0x50] sm:$0x1]
        %v212 = vld [vmem:[%s187 + $0x5c] sm:$0x1]
        %vm213 = vsmask.f32 3328
        %vm214 = vsmask.f32 7440
        %vm215 = vmor %vm213, %vm214
        %v217 = vshrl.u32 %v188, 16
        %v219 = vrot.slane %v217, 4
        %v220 = vshll.u32 %v188, 16
        %v222 = vrot.slane %v220, 5
        %v223 = vor.u32 %v219, %v222
        %v224 = vrot.slane %v223, 4
        %v226 = vshll.u32 %v189, 16
        %v228 = vrot.slane %v226, 5
        %v229 = vsel %vm215, %v224, %v228
        %v230 = vshrl.u32 %v189, 16
        %v232 = vrot.slane %v230, 4
        %v233 = vor.u32 %v232, %v228
        %v234 = vrot.slane %v233, 4
        %v236 = vshll.u32 %v205, 16
        %v238 = vrot.slane %v236, 5
        %v239 = vsel %vm215, %v234, %v238
        %v241 = vshrl.u32 %v190, 16
        %v243 = vrot.slane %v241, 4
        %v244 = vshll.u32 %v190, 16
        %v246 = vrot.slane %v244, 5
        %v247 = vor.u32 %v243, %v246
        %v248 = vrot.slane %v247, 4
        %v250 = vshll.u32 %v191, 16
        %v252 = vrot.slane %v250, 5
        %v253 = vsel %vm215, %v248, %v252
        %v254 = vshrl.u32 %v191, 16
        %v256 = vrot.slane %v254, 4
        %v257 = vor.u32 %v256, %v252
        %v258 = vrot.slane %v257, 4
        %v260 = vshll.u32 %v206, 16
        %v262 = vrot.slane %v260, 5
        %v263 = vsel %vm215, %v258, %v262
        %v265 = vshrl.u32 %v192, 16
        %v267 = vrot.slane %v265, 4
        %v268 = vshll.u32 %v192, 16
        %v270 = vrot.slane %v268, 5
        %v271 = vor.u32 %v267, %v270
        %v272 = vrot.slane %v271, 4
        %v274 = vshll.u32 %v193, 16
        %v276 = vrot.slane %v274, 5
        %v277 = vsel %vm215, %v272, %v276
        %v278 = vshrl.u32 %v193, 16
        %v280 = vrot.slane %v278, 4
        %v281 = vor.u32 %v280, %v276
        %v282 = vrot.slane %v281, 4
        %v284 = vshll.u32 %v207, 16
        %v286 = vrot.slane %v284, 5
        %v287 = vsel %vm215, %v282, %v286
        %v289 = vshrl.u32 %v194, 16
        %v291 = vrot.slane %v289, 4
        %v292 = vshll.u32 %v194, 16
        %v294 = vrot.slane %v292, 5
        %v295 = vor.u32 %v291, %v294
        %v296 = vrot.slane %v295, 4
        %v298 = vshll.u32 %v195, 16
        %v300 = vrot.slane %v298, 5
        %v301 = vsel %vm215, %v296, %v300
        %v302 = vshrl.u32 %v195, 16
        %v304 = vrot.slane %v302, 4
        %v305 = vor.u32 %v304, %v300
        %v306 = vrot.slane %v305, 4
        %v308 = vshll.u32 %v208, 16
        %v310 = vrot.slane %v308, 5
        %v311 = vsel %vm215, %v306, %v310
        %v313 = vshrl.u32 %v196, 16
        %v315 = vrot.slane %v313, 4
        %v316 = vshll.u32 %v196, 16
        %v318 = vrot.slane %v316, 5
        %v319 = vor.u32 %v315, %v318
        %v320 = vrot.slane %v319, 4
        %v322 = vshll.u32 %v197, 16
        %v324 = vrot.slane %v322, 5
        %v325 = vsel %vm215, %v320, %v324
        %v326 = vshrl.u32 %v197, 16
        %v328 = vrot.slane %v326, 4
        %v329 = vor.u32 %v328, %v324
        %v330 = vrot.slane %v329, 4
        %v332 = vshll.u32 %v209, 16
        %v334 = vrot.slane %v332, 5
        %v335 = vsel %vm215, %v330, %v334
        %v337 = vshrl.u32 %v198, 16
        %v339 = vrot.slane %v337, 4
        %v340 = vshll.u32 %v198, 16
        %v342 = vrot.slane %v340, 5
        %v343 = vor.u32 %v339, %v342
        %v344 = vrot.slane %v343, 4
        %v346 = vshll.u32 %v199, 16
        %v348 = vrot.slane %v346, 5
        %v349 = vsel %vm215, %v344, %v348
        %v350 = vshrl.u32 %v199, 16
        %v352 = vrot.slane %v350, 4
        %v353 = vor.u32 %v352, %v348
        %v354 = vrot.slane %v353, 4
        %v356 = vshll.u32 %v210, 16
        %v358 = vrot.slane %v356, 5
        %v359 = vsel %vm215, %v354, %v358
        %v361 = vshrl.u32 %v200, 16
        %v363 = vrot.slane %v361, 4
        %v364 = vshll.u32 %v200, 16
        %v366 = vrot.slane %v364, 5
        %v367 = vor.u32 %v363, %v366
        %v368 = vrot.slane %v367, 4
        %v370 = vshll.u32 %v201, 16
        %v372 = vrot.slane %v370, 5
        %v373 = vsel %vm215, %v368, %v372
        %v374 = vshrl.u32 %v201, 16
        %v376 = vrot.slane %v374, 4
        %v377 = vor.u32 %v376, %v372
        %v378 = vrot.slane %v377, 4
        %v380 = vshll.u32 %v211, 16
        %v382 = vrot.slane %v380, 5
        %v383 = vsel %vm215, %v378, %v382
        %v385 = vshrl.u32 %v202, 16
        %v387 = vrot.slane %v385, 4
        %v388 = vshll.u32 %v202, 16
        %v390 = vrot.slane %v388, 5
        %v391 = vor.u32 %v387, %v390
        %v392 = vrot.slane %v391, 4
        %v394 = vshll.u32 %v203, 16
        %v396 = vrot.slane %v394, 5
        %v397 = vsel %vm215, %v392, %v396
        %v398 = vshrl.u32 %v203, 16
        %v400 = vrot.slane %v398, 4
        %v401 = vor.u32 %v400, %v396
        %v402 = vrot.slane %v401, 4
        %v404 = vshll.u32 %v212, 16
        %v406 = vrot.slane %v404, 5
        %v407 = vsel %vm215, %v402, %v406
        %s408 = scalar_lea.vmem %s1, 2
        %v409 = vld [vmem:[%s408] sm:$0x3]
        %v410 = vunpack.c.l.b16 %v229
        %v411 = vunpack.c.l.b16 %v239
        %v412 = vunpack.c.l.b16 %v253
        %v413 = vunpack.c.l.b16 %v263
        %v414 = vunpack.c.l.b16 %v277
        %v415 = vunpack.c.l.b16 %v287
        %v416 = vunpack.c.l.b16 %v301
        %v417 = vunpack.c.l.b16 %v311
        %v418 = vunpack.c.l.b16 %v325
        %v419 = vunpack.c.l.b16 %v335
        %v420 = vunpack.c.l.b16 %v349
        %v421 = vunpack.c.l.b16 %v359
        %v422 = vunpack.c.l.b16 %v373
        %v423 = vunpack.c.l.b16 %v383
        %v424 = vunpack.c.l.b16 %v397
        %v425 = vunpack.c.l.b16 %v407
        %v426 = vpack.c.b16 %v411, %v410
        %v427 = vpack.c.b16 %v413, %v412
        %v428 = vpack.c.b16 %v415, %v414
        %v429 = vpack.c.b16 %v417, %v416
        %v430 = vpack.c.b16 %v419, %v418
        %v431 = vpack.c.b16 %v421, %v420
        %v432 = vpack.c.b16 %v423, %v422
        %v433 = vpack.c.b16 %v425, %v424
        %vm434 = vcmask 31744
        %v436 = vsel %vm434, %v426, 0
        %v439 = vsel %vm434, %v427, 0
        %v442 = vsel %vm434, %v428, 0
        %v445 = vsel %vm434, %v429, 0
        %v448 = vsel %vm434, %v430, 0
        %v451 = vsel %vm434, %v431, 0
        %v454 = vsel %vm434, %v432, 0
        %v457 = vsel %vm434, %v433, 0
        %vm459 = vcmask 1041408
        %v461 = vsel %vm459, %v409, 0
        %463 = vmatpush.bf16.msra.mxu0 0
        %464 = vmatpush.bf16.msra.mxu0 0
        %465 = vmatpush.bf16.msra.mxu0 0
        %466 = vmatpush.bf16.msra.mxu0 0
        %467 = vmatpush.bf16.msra.mxu0 0
        %468 = vmatpush.bf16.msra.mxu0 0
        %469 = vmatpush.bf16.msra.mxu0 0
        %470 = vmatpush.bf16.msra.mxu0 %v461
        %471 = vmatmul.bf16.gmra.mxu0 %v436
        %v472 = vpop.f32.mrf.mxu0
        %v473 = vadd.f32 0.0, %v472
        %v474 = vpop.f32.mrf.mxu0
        %v475 = vadd.f32 0.0, %v474
        %476 = vmatmul.bf16.gmra.mxu0 %v439
        %v477 = vpop.f32.mrf.mxu0
        %v478 = vadd.f32 0.0, %v477
        %v479 = vpop.f32.mrf.mxu0
        %v480 = vadd.f32 0.0, %v479
        %481 = vmatmul.bf16.gmra.mxu0 %v442
        %v482 = vpop.f32.mrf.mxu0
        %v483 = vadd.f32 0.0, %v482
        %v484 = vpop.f32.mrf.mxu0
        %v485 = vadd.f32 0.0, %v484
        %486 = vmatmul.bf16.gmra.mxu0 %v445
        %v487 = vpop.f32.mrf.mxu0
        %v488 = vadd.f32 0.0, %v487
        %v489 = vpop.f32.mrf.mxu0
        %v490 = vadd.f32 0.0, %v489
        %491 = vmatmul.bf16.gmra.mxu0 %v448
        %v492 = vpop.f32.mrf.mxu0
        %v493 = vadd.f32 0.0, %v492
        %v494 = vpop.f32.mrf.mxu0
        %v495 = vadd.f32 0.0, %v494
        %496 = vmatmul.bf16.gmra.mxu0 %v451
        %v497 = vpop.f32.mrf.mxu0
        %v498 = vadd.f32 0.0, %v497
        %v499 = vpop.f32.mrf.mxu0
        %v500 = vadd.f32 0.0, %v499
        %501 = vmatmul.bf16.gmra.mxu0 %v454
        %v502 = vpop.f32.mrf.mxu0
        %v503 = vadd.f32 0.0, %v502
        %v504 = vpop.f32.mrf.mxu0
        %v505 = vadd.f32 0.0, %v504
        %506 = vmatmul.bf16.gmra.mxu0 %v457
        %v507 = vpop.f32.mrf.mxu0
        %v508 = vadd.f32 0.0, %v507
        %v509 = vpop.f32.mrf.mxu0
        %v510 = vadd.f32 0.0, %v509
        %511 = vdwg.mxu0
        %v528 = vunpack.c.l.b16 %v188
        %v529 = vunpack.c.l.b16 %v189
        %v530 = vunpack.c.l.b16 %v190
        %v531 = vunpack.c.l.b16 %v191
        %v532 = vunpack.c.l.b16 %v192
        %v533 = vunpack.c.l.b16 %v193
        %v534 = vunpack.c.l.b16 %v194
        %v535 = vunpack.c.l.b16 %v195
        %v536 = vunpack.c.l.b16 %v196
        %v537 = vunpack.c.l.b16 %v197
        %v538 = vunpack.c.l.b16 %v198
        %v539 = vunpack.c.l.b16 %v199
        %v540 = vunpack.c.l.b16 %v200
        %v541 = vunpack.c.l.b16 %v201
        %v542 = vunpack.c.l.b16 %v202
        %v543 = vunpack.c.l.b16 %v203
        %v544 = vpack.c.b16 %v529, %v528
        %v545 = vpack.c.b16 %v531, %v530
        %v546 = vpack.c.b16 %v533, %v532
        %v547 = vpack.c.b16 %v535, %v534
        %v548 = vpack.c.b16 %v537, %v536
        %v549 = vpack.c.b16 %v539, %v538
        %v550 = vpack.c.b16 %v541, %v540
        %v551 = vpack.c.b16 %v543, %v542
        %v553 = vsel %vm434, %v544, 0
        %v556 = vsel %vm434, %v545, 0
        %v559 = vsel %vm434, %v546, 0
        %v562 = vsel %vm434, %v547, 0
        %v565 = vsel %vm434, %v548, 0
        %v568 = vsel %vm434, %v549, 0
        %v571 = vsel %vm434, %v550, 0
        %v574 = vsel %vm434, %v551, 0
        %v577 = vsel %vm459, %v204, 0
        %579 = vmatpush.bf16.msra.mxu0 0
        %580 = vmatpush.bf16.msra.mxu0 0
        %581 = vmatpush.bf16.msra.mxu0 0
        %582 = vmatpush.bf16.msra.mxu0 0
        %583 = vmatpush.bf16.msra.mxu0 0
        %584 = vmatpush.bf16.msra.mxu0 0
        %585 = vmatpush.bf16.msra.mxu0 0
        %586 = vmatpush.bf16.msra.mxu0 %v577
        %587 = vmatmul.bf16.gmra.mxu0 %v553
        %v588 = vpop.f32.mrf.mxu0
        %v589 = vadd.f32 %v473, %v588
        %v590 = vpop.f32.mrf.mxu0
        %v591 = vadd.f32 %v475, %v590
        %592 = vmatmul.bf16.gmra.mxu0 %v556
        %v593 = vpop.f32.mrf.mxu0
        %v594 = vadd.f32 %v478, %v593
        %v595 = vpop.f32.mrf.mxu0
        %v596 = vadd.f32 %v480, %v595
        %597 = vmatmul.bf16.gmra.mxu0 %v559
        %v598 = vpop.f32.mrf.mxu0
        %v599 = vadd.f32 %v483, %v598
        %v600 = vpop.f32.mrf.mxu0
        %v601 = vadd.f32 %v485, %v600
        %602 = vmatmul.bf16.gmra.mxu0 %v562
        %v603 = vpop.f32.mrf.mxu0
        %v604 = vadd.f32 %v488, %v603
        %v605 = vpop.f32.mrf.mxu0
        %v606 = vadd.f32 %v490, %v605
        %607 = vmatmul.bf16.gmra.mxu0 %v565
        %v608 = vpop.f32.mrf.mxu0
        %v609 = vadd.f32 %v493, %v608
        %v610 = vpop.f32.mrf.mxu0
        %v611 = vadd.f32 %v495, %v610
        %612 = vmatmul.bf16.gmra.mxu0 %v568
        %v613 = vpop.f32.mrf.mxu0
        %v614 = vadd.f32 %v498, %v613
        %v615 = vpop.f32.mrf.mxu0
        %v616 = vadd.f32 %v500, %v615
        %617 = vmatmul.bf16.gmra.mxu0 %v571
        %v618 = vpop.f32.mrf.mxu0
        %v619 = vadd.f32 %v503, %v618
        %v620 = vpop.f32.mrf.mxu0
        %v621 = vadd.f32 %v505, %v620
        %622 = vmatmul.bf16.gmra.mxu0 %v574
        %v623 = vpop.f32.mrf.mxu0
        %v624 = vadd.f32 %v508, %v623
        %v625 = vpop.f32.mrf.mxu0
        %v626 = vadd.f32 %v510, %v625
        %627 = vdwg.mxu0
        %v628 = vld [vmem:[%s187] sm:$0xe]
        %v629 = vld [vmem:[%s187 + $0xc] sm:$0xe]
        %v630 = vld [vmem:[%s187 + $0x18] sm:$0xe]
        %v631 = vld [vmem:[%s187 + $0x24] sm:$0xe]
        %v632 = vld [vmem:[%s187 + $0x30] sm:$0xe]
        %v633 = vld [vmem:[%s187 + $0x3c] sm:$0xe]
        %v634 = vld [vmem:[%s187 + $0x48] sm:$0xe]
        %v635 = vld [vmem:[%s187 + $0x54] sm:$0xe]
        %vm652 = vcmask 1042432
        %vm653 = vcmask 1046532
        %vm654 = vmor %vm652, %vm653
        %v655 = vrot.slane %v628, 5
        %v656 = vrot.slane %v655, 4
        %v657 = vrot.slane %v189, 5
        %v658 = vsel %vm654, %v656, %v657
        %v659 = vrot.slane %v657, 4
        %v660 = vrot.slane %v205, 5
        %v661 = vsel %vm654, %v659, %v660
        %v662 = vrot.slane %v629, 5
        %v663 = vrot.slane %v662, 4
        %v664 = vrot.slane %v191, 5
        %v665 = vsel %vm654, %v663, %v664
        %v666 = vrot.slane %v664, 4
        %v667 = vrot.slane %v206, 5
        %v668 = vsel %vm654, %v666, %v667
        %v669 = vrot.slane %v630, 5
        %v670 = vrot.slane %v669, 4
        %v671 = vrot.slane %v193, 5
        %v672 = vsel %vm654, %v670, %v671
        %v673 = vrot.slane %v671, 4
        %v674 = vrot.slane %v207, 5
        %v675 = vsel %vm654, %v673, %v674
        %v676 = vrot.slane %v631, 5
        %v677 = vrot.slane %v676, 4
        %v678 = vrot.slane %v195, 5
        %v679 = vsel %vm654, %v677, %v678
        %v680 = vrot.slane %v678, 4
        %v681 = vrot.slane %v208, 5
        %v682 = vsel %vm654, %v680, %v681
        %v683 = vrot.slane %v632, 5
        %v684 = vrot.slane %v683, 4
        %v685 = vrot.slane %v197, 5
        %v686 = vsel %vm654, %v684, %v685
        %v687 = vrot.slane %v685, 4
        %v688 = vrot.slane %v209, 5
        %v689 = vsel %vm654, %v687, %v688
        %v690 = vrot.slane %v633, 5
        %v691 = vrot.slane %v690, 4
        %v692 = vrot.slane %v199, 5
        %v693 = vsel %vm654, %v691, %v692
        %v694 = vrot.slane %v692, 4
        %v695 = vrot.slane %v210, 5
        %v696 = vsel %vm654, %v694, %v695
        %v697 = vrot.slane %v634, 5
        %v698 = vrot.slane %v697, 4
        %v699 = vrot.slane %v201, 5
        %v700 = vsel %vm654, %v698, %v699
        %v701 = vrot.slane %v699, 4
        %v702 = vrot.slane %v211, 5
        %v703 = vsel %vm654, %v701, %v702
        %v704 = vrot.slane %v635, 5
        %v705 = vrot.slane %v704, 4
        %v706 = vrot.slane %v203, 5
        %v707 = vsel %vm654, %v705, %v706
        %v708 = vrot.slane %v706, 4
        %v709 = vrot.slane %v212, 5
        %v710 = vsel %vm654, %v708, %v709
        %s711 = scalar_lea.vmem %s1, 4
        %v712 = vld [vmem:[%s711] sm:$0x3]
        %v713 = vunpack.c.l.b16 %v658
        %v714 = vunpack.c.l.b16 %v661
        %v715 = vunpack.c.l.b16 %v665
        %v716 = vunpack.c.l.b16 %v668
        %v717 = vunpack.c.l.b16 %v672
        %v718 = vunpack.c.l.b16 %v675
        %v719 = vunpack.c.l.b16 %v679
        %v720 = vunpack.c.l.b16 %v682
        %v721 = vunpack.c.l.b16 %v686
        %v722 = vunpack.c.l.b16 %v689
        %v723 = vunpack.c.l.b16 %v693
        %v724 = vunpack.c.l.b16 %v696
        %v725 = vunpack.c.l.b16 %v700
        %v726 = vunpack.c.l.b16 %v703
        %v727 = vunpack.c.l.b16 %v707
        %v728 = vunpack.c.l.b16 %v710
        %v729 = vpack.c.b16 %v714, %v713
        %v730 = vpack.c.b16 %v716, %v715
        %v731 = vpack.c.b16 %v718, %v717
        %v732 = vpack.c.b16 %v720, %v719
        %v733 = vpack.c.b16 %v722, %v721
        %v734 = vpack.c.b16 %v724, %v723
        %v735 = vpack.c.b16 %v726, %v725
        %v736 = vpack.c.b16 %v728, %v727
        %v738 = vsel %vm434, %v729, 0
        %v741 = vsel %vm434, %v730, 0
        %v744 = vsel %vm434, %v731, 0
        %v747 = vsel %vm434, %v732, 0
        %v750 = vsel %vm434, %v733, 0
        %v753 = vsel %vm434, %v734, 0
        %v756 = vsel %vm434, %v735, 0
        %v759 = vsel %vm434, %v736, 0
        %v762 = vsel %vm459, %v712, 0
        %764 = vmatpush.bf16.msra.mxu0 0
        %765 = vmatpush.bf16.msra.mxu0 0
        %766 = vmatpush.bf16.msra.mxu0 0
        %767 = vmatpush.bf16.msra.mxu0 0
        %768 = vmatpush.bf16.msra.mxu0 0
        %769 = vmatpush.bf16.msra.mxu0 0
        %770 = vmatpush.bf16.msra.mxu0 0
        %771 = vmatpush.bf16.msra.mxu0 %v762
        %772 = vmatmul.bf16.gmra.mxu0 %v738
        %v773 = vpop.f32.mrf.mxu0
        %v774 = vadd.f32 0.0, %v773
        %v775 = vpop.f32.mrf.mxu0
        %v776 = vadd.f32 0.0, %v775
        %777 = vmatmul.bf16.gmra.mxu0 %v741
        %v778 = vpop.f32.mrf.mxu0
        %v779 = vadd.f32 0.0, %v778
        %v780 = vpop.f32.mrf.mxu0
        %v781 = vadd.f32 0.0, %v780
        %782 = vmatmul.bf16.gmra.mxu0 %v744
        %v783 = vpop.f32.mrf.mxu0
        %v784 = vadd.f32 0.0, %v783
        %v785 = vpop.f32.mrf.mxu0
        %v786 = vadd.f32 0.0, %v785
        %787 = vmatmul.bf16.gmra.mxu0 %v747
        %v788 = vpop.f32.mrf.mxu0
        %v789 = vadd.f32 0.0, %v788
        %v790 = vpop.f32.mrf.mxu0
        %v791 = vadd.f32 0.0, %v790
        %792 = vmatmul.bf16.gmra.mxu0 %v750
        %v793 = vpop.f32.mrf.mxu0
        %v794 = vadd.f32 0.0, %v793
        %v795 = vpop.f32.mrf.mxu0
        %v796 = vadd.f32 0.0, %v795
        %797 = vmatmul.bf16.gmra.mxu0 %v753
        %v798 = vpop.f32.mrf.mxu0
        %v799 = vadd.f32 0.0, %v798
        %v800 = vpop.f32.mrf.mxu0
        %v801 = vadd.f32 0.0, %v800
        %802 = vmatmul.bf16.gmra.mxu0 %v756
        %v803 = vpop.f32.mrf.mxu0
        %v804 = vadd.f32 0.0, %v803
        %v805 = vpop.f32.mrf.mxu0
        %v806 = vadd.f32 0.0, %v805
        %807 = vmatmul.bf16.gmra.mxu0 %v759
        %v808 = vpop.f32.mrf.mxu0
        %v809 = vadd.f32 0.0, %v808
        %v810 = vpop.f32.mrf.mxu0
        %v811 = vadd.f32 0.0, %v810
        %812 = vdwg.mxu0
        %v813 = vadd.f32 %v589, %v774
        %v814 = vadd.f32 %v591, %v776
        %v815 = vadd.f32 %v594, %v779
        %v816 = vadd.f32 %v596, %v781
        %v817 = vadd.f32 %v599, %v784
        %v818 = vadd.f32 %v601, %v786
        %v819 = vadd.f32 %v604, %v789
        %v820 = vadd.f32 %v606, %v791
        %v821 = vadd.f32 %v609, %v794
        %v822 = vadd.f32 %v611, %v796
        %v823 = vadd.f32 %v614, %v799
        %v824 = vadd.f32 %v616, %v801
        %v825 = vadd.f32 %v619, %v804
        %v826 = vadd.f32 %v621, %v806
        %v827 = vadd.f32 %v624, %v809
        %v828 = vadd.f32 %v626, %v811
        %s829 = sadd.s32 %s184, 1
        %s830 = smul.u32 %s829, 3
        %s831 = smul.addr %s830, 4
        %s832 = scalar_lea.vmem %s182, %s831
        %v833 = vld [vmem:[%s832] sm:$0xf]
        %v834 = vld [vmem:[%s832 + $0x4] sm:$0xf]
        %v835 = vld [vmem:[%s832 + $0xc] sm:$0xf]
        %v836 = vld [vmem:[%s832 + $0x10] sm:$0xf]
        %v837 = vld [vmem:[%s832 + $0x18] sm:$0xf]
        %v838 = vld [vmem:[%s832 + $0x1c] sm:$0xf]
        %v839 = vld [vmem:[%s832 + $0x24] sm:$0xf]
        %v840 = vld [vmem:[%s832 + $0x28] sm:$0xf]
        %v841 = vld [vmem:[%s832 + $0x30] sm:$0xf]
        %v842 = vld [vmem:[%s832 + $0x34] sm:$0xf]
        %v843 = vld [vmem:[%s832 + $0x3c] sm:$0xf]
        %v844 = vld [vmem:[%s832 + $0x40] sm:$0xf]
        %v845 = vld [vmem:[%s832 + $0x48] sm:$0xf]
        %v846 = vld [vmem:[%s832 + $0x4c] sm:$0xf]
        %v847 = vld [vmem:[%s832 + $0x54] sm:$0xf]
        %v848 = vld [vmem:[%s832 + $0x58] sm:$0xf]
        %s849 = scalar_lea.vmem %s1, 6
        %v850 = vld [vmem:[%s849] sm:$0x3]
        %v867 = vunpack.c.l.b16 %v833
        %v868 = vunpack.c.l.b16 %v834
        %v869 = vunpack.c.l.b16 %v835
        %v870 = vunpack.c.l.b16 %v836
        %v871 = vunpack.c.l.b16 %v837
        %v872 = vunpack.c.l.b16 %v838
        %v873 = vunpack.c.l.b16 %v839
        %v874 = vunpack.c.l.b16 %v840
        %v875 = vunpack.c.l.b16 %v841
        %v876 = vunpack.c.l.b16 %v842
        %v877 = vunpack.c.l.b16 %v843
        %v878 = vunpack.c.l.b16 %v844
        %v879 = vunpack.c.l.b16 %v845
        %v880 = vunpack.c.l.b16 %v846
        %v881 = vunpack.c.l.b16 %v847
        %v882 = vunpack.c.l.b16 %v848
        %v883 = vpack.c.b16 %v868, %v867
        %v884 = vpack.c.b16 %v870, %v869
        %v885 = vpack.c.b16 %v872, %v871
        %v886 = vpack.c.b16 %v874, %v873
        %v887 = vpack.c.b16 %v876, %v875
        %v888 = vpack.c.b16 %v878, %v877
        %v889 = vpack.c.b16 %v880, %v879
        %v890 = vpack.c.b16 %v882, %v881
        %v892 = vsel %vm434, %v883, 0
        %v895 = vsel %vm434, %v884, 0
        %v898 = vsel %vm434, %v885, 0
        %v901 = vsel %vm434, %v886, 0
        %v904 = vsel %vm434, %v887, 0
        %v907 = vsel %vm434, %v888, 0
        %v910 = vsel %vm434, %v889, 0
        %v913 = vsel %vm434, %v890, 0
        %v916 = vsel %vm459, %v850, 0
        %918 = vmatpush.bf16.msra.mxu0 0
        %919 = vmatpush.bf16.msra.mxu0 0
        %920 = vmatpush.bf16.msra.mxu0 0
        %921 = vmatpush.bf16.msra.mxu0 0
        %922 = vmatpush.bf16.msra.mxu0 0
        %923 = vmatpush.bf16.msra.mxu0 0
        %924 = vmatpush.bf16.msra.mxu0 0
        %925 = vmatpush.bf16.msra.mxu0 %v916
        %926 = vmatmul.bf16.gmra.mxu0 %v892
        %v927 = vpop.f32.mrf.mxu0
        %v928 = vadd.f32 0.0, %v927
        %v929 = vpop.f32.mrf.mxu0
        %v930 = vadd.f32 0.0, %v929
        %931 = vmatmul.bf16.gmra.mxu0 %v895
        %v932 = vpop.f32.mrf.mxu0
        %v933 = vadd.f32 0.0, %v932
        %v934 = vpop.f32.mrf.mxu0
        %v935 = vadd.f32 0.0, %v934
        %936 = vmatmul.bf16.gmra.mxu0 %v898
        %v937 = vpop.f32.mrf.mxu0
        %v938 = vadd.f32 0.0, %v937
        %v939 = vpop.f32.mrf.mxu0
        %v940 = vadd.f32 0.0, %v939
        %941 = vmatmul.bf16.gmra.mxu0 %v901
        %v942 = vpop.f32.mrf.mxu0
        %v943 = vadd.f32 0.0, %v942
        %v944 = vpop.f32.mrf.mxu0
        %v945 = vadd.f32 0.0, %v944
        %946 = vmatmul.bf16.gmra.mxu0 %v904
        %v947 = vpop.f32.mrf.mxu0
        %v948 = vadd.f32 0.0, %v947
        %v949 = vpop.f32.mrf.mxu0
        %v950 = vadd.f32 0.0, %v949
        %951 = vmatmul.bf16.gmra.mxu0 %v907
        %v952 = vpop.f32.mrf.mxu0
        %v953 = vadd.f32 0.0, %v952
        %v954 = vpop.f32.mrf.mxu0
        %v955 = vadd.f32 0.0, %v954
        %956 = vmatmul.bf16.gmra.mxu0 %v910
        %v957 = vpop.f32.mrf.mxu0
        %v958 = vadd.f32 0.0, %v957
        %v959 = vpop.f32.mrf.mxu0
        %v960 = vadd.f32 0.0, %v959
        %961 = vmatmul.bf16.gmra.mxu0 %v913
        %v962 = vpop.f32.mrf.mxu0
        %v963 = vadd.f32 0.0, %v962
        %v964 = vpop.f32.mrf.mxu0
        %v965 = vadd.f32 0.0, %v964
        %966 = vdwg.mxu0
        %v967 = vadd.f32 %v813, %v928
        %v968 = vadd.f32 %v814, %v930
        %v969 = vadd.f32 %v815, %v933
        %v970 = vadd.f32 %v816, %v935
        %v971 = vadd.f32 %v817, %v938
        %v972 = vadd.f32 %v818, %v940
        %v973 = vadd.f32 %v819, %v943
        %v974 = vadd.f32 %v820, %v945
        %v975 = vadd.f32 %v821, %v948
        %v976 = vadd.f32 %v822, %v950
        %v977 = vadd.f32 %v823, %v953
        %v978 = vadd.f32 %v824, %v955
        %v979 = vadd.f32 %v825, %v958
        %v980 = vadd.f32 %v826, %v960
        %v981 = vadd.f32 %v827, %v963
        %v982 = vadd.f32 %v828, %v965
        %v983 = vld [vmem:[%s832] sm:$0xf]
        %v984 = vld [vmem:[%s832 + $0x4] sm:$0xf]
        %v985 = vld [vmem:[%s832 + $0x8] sm:$0x1]
        %v986 = vld [vmem:[%s832 + $0xc] sm:$0xf]
        %v987 = vld [vmem:[%s832 + $0x10] sm:$0xf]
        %v988 = vld [vmem:[%s832 + $0x14] sm:$0x1]
        %v989 = vld [vmem:[%s832 + $0x18] sm:$0xf]
        %v990 = vld [vmem:[%s832 + $0x1c] sm:$0xf]
        %v991 = vld [vmem:[%s832 + $0x20] sm:$0x1]
        %v992 = vld [vmem:[%s832 + $0x24] sm:$0xf]
        %v993 = vld [vmem:[%s832 + $0x28] sm:$0xf]
        %v994 = vld [vmem:[%s832 + $0x2c] sm:$0x1]
        %v995 = vld [vmem:[%s832 + $0x30] sm:$0xf]
        %v996 = vld [vmem:[%s832 + $0x34] sm:$0xf]
        %v997 = vld [vmem:[%s832 + $0x38] sm:$0x1]
        %v998 = vld [vmem:[%s832 + $0x3c] sm:$0xf]
        %v999 = vld [vmem:[%s832 + $0x40] sm:$0xf]
        %v1000 = vld [vmem:[%s832 + $0x44] sm:$0x1]
        %v1001 = vld [vmem:[%s832 + $0x48] sm:$0xf]
        %v1002 = vld [vmem:[%s832 + $0x4c] sm:$0xf]
        %v1003 = vld [vmem:[%s832 + $0x50] sm:$0x1]
        %v1004 = vld [vmem:[%s832 + $0x54] sm:$0xf]
        %v1005 = vld [vmem:[%s832 + $0x58] sm:$0xf]
        %v1006 = vld [vmem:[%s832 + $0x5c] sm:$0x1]
        %v1008 = vshrl.u32 %v983, 16
        %v1010 = vrot.slane %v1008, 4
        %v1011 = vshll.u32 %v983, 16
        %v1013 = vrot.slane %v1011, 5
        %v1014 = vor.u32 %v1010, %v1013
        %v1015 = vrot.slane %v1014, 4
        %v1017 = vshll.u32 %v984, 16
        %v1019 = vrot.slane %v1017, 5
        %v1020 = vsel %vm215, %v1015, %v1019
        %v1021 = vshrl.u32 %v984, 16
        %v1023 = vrot.slane %v1021, 4
        %v1024 = vor.u32 %v1023, %v1019
        %v1025 = vrot.slane %v1024, 4
        %v1027 = vshll.u32 %v985, 16
        %v1029 = vrot.slane %v1027, 5
        %v1030 = vsel %vm215, %v1025, %v1029
        %v1032 = vshrl.u32 %v986, 16
        %v1034 = vrot.slane %v1032, 4
        %v1035 = vshll.u32 %v986, 16
        %v1037 = vrot.slane %v1035, 5
        %v1038 = vor.u32 %v1034, %v1037
        %v1039 = vrot.slane %v1038, 4
        %v1041 = vshll.u32 %v987, 16
        %v1043 = vrot.slane %v1041, 5
        %v1044 = vsel %vm215, %v1039, %v1043
        %v1045 = vshrl.u32 %v987, 16
        %v1047 = vrot.slane %v1045, 4
        %v1048 = vor.u32 %v1047, %v1043
        %v1049 = vrot.slane %v1048, 4
        %v1051 = vshll.u32 %v988, 16
        %v1053 = vrot.slane %v1051, 5
        %v1054 = vsel %vm215, %v1049, %v1053
        %v1056 = vshrl.u32 %v989, 16
        %v1058 = vrot.slane %v1056, 4
        %v1059 = vshll.u32 %v989, 16
        %v1061 = vrot.slane %v1059, 5
        %v1062 = vor.u32 %v1058, %v1061
        %v1063 = vrot.slane %v1062, 4
        %v1065 = vshll.u32 %v990, 16
        %v1067 = vrot.slane %v1065, 5
        %v1068 = vsel %vm215, %v1063, %v1067
        %v1069 = vshrl.u32 %v990, 16
        %v1071 = vrot.slane %v1069, 4
        %v1072 = vor.u32 %v1071, %v1067
        %v1073 = vrot.slane %v1072, 4
        %v1075 = vshll.u32 %v991, 16
        %v1077 = vrot.slane %v1075, 5
        %v1078 = vsel %vm215, %v1073, %v1077
        %v1080 = vshrl.u32 %v992, 16
        %v1082 = vrot.slane %v1080, 4
        %v1083 = vshll.u32 %v992, 16
        %v1085 = vrot.slane %v1083, 5
        %v1086 = vor.u32 %v1082, %v1085
        %v1087 = vrot.slane %v1086, 4
        %v1089 = vshll.u32 %v993, 16
        %v1091 = vrot.slane %v1089, 5
        %v1092 = vsel %vm215, %v1087, %v1091
        %v1093 = vshrl.u32 %v993, 16
        %v1095 = vrot.slane %v1093, 4
        %v1096 = vor.u32 %v1095, %v1091
        %v1097 = vrot.slane %v1096, 4
        %v1099 = vshll.u32 %v994, 16
        %v1101 = vrot.slane %v1099, 5
        %v1102 = vsel %vm215, %v1097, %v1101
        %v1104 = vshrl.u32 %v995, 16
        %v1106 = vrot.slane %v1104, 4
        %v1107 = vshll.u32 %v995, 16
        %v1109 = vrot.slane %v1107, 5
        %v1110 = vor.u32 %v1106, %v1109
        %v1111 = vrot.slane %v1110, 4
        %v1113 = vshll.u32 %v996, 16
        %v1115 = vrot.slane %v1113, 5
        %v1116 = vsel %vm215, %v1111, %v1115
        %v1117 = vshrl.u32 %v996, 16
        %v1119 = vrot.slane %v1117, 4
        %v1120 = vor.u32 %v1119, %v1115
        %v1121 = vrot.slane %v1120, 4
        %v1123 = vshll.u32 %v997, 16
        %v1125 = vrot.slane %v1123, 5
        %v1126 = vsel %vm215, %v1121, %v1125
        %v1128 = vshrl.u32 %v998, 16
        %v1130 = vrot.slane %v1128, 4
        %v1131 = vshll.u32 %v998, 16
        %v1133 = vrot.slane %v1131, 5
        %v1134 = vor.u32 %v1130, %v1133
        %v1135 = vrot.slane %v1134, 4
        %v1137 = vshll.u32 %v999, 16
        %v1139 = vrot.slane %v1137, 5
        %v1140 = vsel %vm215, %v1135, %v1139
        %v1141 = vshrl.u32 %v999, 16
        %v1143 = vrot.slane %v1141, 4
        %v1144 = vor.u32 %v1143, %v1139
        %v1145 = vrot.slane %v1144, 4
        %v1147 = vshll.u32 %v1000, 16
        %v1149 = vrot.slane %v1147, 5
        %v1150 = vsel %vm215, %v1145, %v1149
        %v1152 = vshrl.u32 %v1001, 16
        %v1154 = vrot.slane %v1152, 4
        %v1155 = vshll.u32 %v1001, 16
        %v1157 = vrot.slane %v1155, 5
        %v1158 = vor.u32 %v1154, %v1157
        %v1159 = vrot.slane %v1158, 4
        %v1161 = vshll.u32 %v1002, 16
        %v1163 = vrot.slane %v1161, 5
        %v1164 = vsel %vm215, %v1159, %v1163
        %v1165 = vshrl.u32 %v1002, 16
        %v1167 = vrot.slane %v1165, 4
        %v1168 = vor.u32 %v1167, %v1163
        %v1169 = vrot.slane %v1168, 4
        %v1171 = vshll.u32 %v1003, 16
        %v1173 = vrot.slane %v1171, 5
        %v1174 = vsel %vm215, %v1169, %v1173
        %v1176 = vshrl.u32 %v1004, 16
        %v1178 = vrot.slane %v1176, 4
        %v1179 = vshll.u32 %v1004, 16
        %v1181 = vrot.slane %v1179, 5
        %v1182 = vor.u32 %v1178, %v1181
        %v1183 = vrot.slane %v1182, 4
        %v1185 = vshll.u32 %v1005, 16
        %v1187 = vrot.slane %v1185, 5
        %v1188 = vsel %vm215, %v1183, %v1187
        %v1189 = vshrl.u32 %v1005, 16
        %v1191 = vrot.slane %v1189, 4
        %v1192 = vor.u32 %v1191, %v1187
        %v1193 = vrot.slane %v1192, 4
        %v1195 = vshll.u32 %v1006, 16
        %v1197 = vrot.slane %v1195, 5
        %v1198 = vsel %vm215, %v1193, %v1197
        %s1199 = scalar_lea.vmem %s1, 8
        %v1200 = vld [vmem:[%s1199] sm:$0x3]
        %v1201 = vunpack.c.l.b16 %v1020
        %v1202 = vunpack.c.l.b16 %v1030
        %v1203 = vunpack.c.l.b16 %v1044
        %v1204 = vunpack.c.l.b16 %v1054
        %v1205 = vunpack.c.l.b16 %v1068
        %v1206 = vunpack.c.l.b16 %v1078
        %v1207 = vunpack.c.l.b16 %v1092
        %v1208 = vunpack.c.l.b16 %v1102
        %v1209 = vunpack.c.l.b16 %v1116
        %v1210 = vunpack.c.l.b16 %v1126
        %v1211 = vunpack.c.l.b16 %v1140
        %v1212 = vunpack.c.l.b16 %v1150
        %v1213 = vunpack.c.l.b16 %v1164
        %v1214 = vunpack.c.l.b16 %v1174
        %v1215 = vunpack.c.l.b16 %v1188
        %v1216 = vunpack.c.l.b16 %v1198
        %v1217 = vpack.c.b16 %v1202, %v1201
        %v1218 = vpack.c.b16 %v1204, %v1203
        %v1219 = vpack.c.b16 %v1206, %v1205
        %v1220 = vpack.c.b16 %v1208, %v1207
        %v1221 = vpack.c.b16 %v1210, %v1209
        %v1222 = vpack.c.b16 %v1212, %v1211
        %v1223 = vpack.c.b16 %v1214, %v1213
        %v1224 = vpack.c.b16 %v1216, %v1215
        %v1226 = vsel %vm434, %v1217, 0
        %v1229 = vsel %vm434, %v1218, 0
        %v1232 = vsel %vm434, %v1219, 0
        %v1235 = vsel %vm434, %v1220, 0
        %v1238 = vsel %vm434, %v1221, 0
        %v1241 = vsel %vm434, %v1222, 0
        %v1244 = vsel %vm434, %v1223, 0
        %v1247 = vsel %vm434, %v1224, 0
        %v1250 = vsel %vm459, %v1200, 0
        %1252 = vmatpush.bf16.msra.mxu0 0
        %1253 = vmatpush.bf16.msra.mxu0 0
        %1254 = vmatpush.bf16.msra.mxu0 0
        %1255 = vmatpush.bf16.msra.mxu0 0
        %1256 = vmatpush.bf16.msra.mxu0 0
        %1257 = vmatpush.bf16.msra.mxu0 0
        %1258 = vmatpush.bf16.msra.mxu0 0
        %1259 = vmatpush.bf16.msra.mxu0 %v1250
        %1260 = vmatmul.bf16.gmra.mxu0 %v1226
        %v1261 = vpop.f32.mrf.mxu0
        %v1262 = vadd.f32 0.0, %v1261
        %v1263 = vpop.f32.mrf.mxu0
        %v1264 = vadd.f32 0.0, %v1263
        %1265 = vmatmul.bf16.gmra.mxu0 %v1229
        %v1266 = vpop.f32.mrf.mxu0
        %v1267 = vadd.f32 0.0, %v1266
        %v1268 = vpop.f32.mrf.mxu0
        %v1269 = vadd.f32 0.0, %v1268
        %1270 = vmatmul.bf16.gmra.mxu0 %v1232
        %v1271 = vpop.f32.mrf.mxu0
        %v1272 = vadd.f32 0.0, %v1271
        %v1273 = vpop.f32.mrf.mxu0
        %v1274 = vadd.f32 0.0, %v1273
        %1275 = vmatmul.bf16.gmra.mxu0 %v1235
        %v1276 = vpop.f32.mrf.mxu0
        %v1277 = vadd.f32 0.0, %v1276
        %v1278 = vpop.f32.mrf.mxu0
        %v1279 = vadd.f32 0.0, %v1278
        %1280 = vmatmul.bf16.gmra.mxu0 %v1238
        %v1281 = vpop.f32.mrf.mxu0
        %v1282 = vadd.f32 0.0, %v1281
        %v1283 = vpop.f32.mrf.mxu0
        %v1284 = vadd.f32 0.0, %v1283
        %1285 = vmatmul.bf16.gmra.mxu0 %v1241
        %v1286 = vpop.f32.mrf.mxu0
        %v1287 = vadd.f32 0.0, %v1286
        %v1288 = vpop.f32.mrf.mxu0
        %v1289 = vadd.f32 0.0, %v1288
        %1290 = vmatmul.bf16.gmra.mxu0 %v1244
        %v1291 = vpop.f32.mrf.mxu0
        %v1292 = vadd.f32 0.0, %v1291
        %v1293 = vpop.f32.mrf.mxu0
        %v1294 = vadd.f32 0.0, %v1293
        %1295 = vmatmul.bf16.gmra.mxu0 %v1247
        %v1296 = vpop.f32.mrf.mxu0
        %v1297 = vadd.f32 0.0, %v1296
        %v1298 = vpop.f32.mrf.mxu0
        %v1299 = vadd.f32 0.0, %v1298
        %1300 = vdwg.mxu0
        %v1301 = vadd.f32 %v967, %v1262
        %v1302 = vadd.f32 %v968, %v1264
        %v1303 = vadd.f32 %v969, %v1267
        %v1304 = vadd.f32 %v970, %v1269
        %v1305 = vadd.f32 %v971, %v1272
        %v1306 = vadd.f32 %v972, %v1274
        %v1307 = vadd.f32 %v973, %v1277
        %v1308 = vadd.f32 %v974, %v1279
        %v1309 = vadd.f32 %v975, %v1282
        %v1310 = vadd.f32 %v976, %v1284
        %v1311 = vadd.f32 %v977, %v1287
        %v1312 = vadd.f32 %v978, %v1289
        %v1313 = vadd.f32 %v979, %v1292
        %v1314 = vadd.f32 %v980, %v1294
        %v1315 = vadd.f32 %v981, %v1297
        %v1316 = vadd.f32 %v982, %v1299
        %v1317 = vld [vmem:[%s832] sm:$0xe]
        %v1318 = vld [vmem:[%s832 + $0xc] sm:$0xe]
        %v1319 = vld [vmem:[%s832 + $0x18] sm:$0xe]
        %v1320 = vld [vmem:[%s832 + $0x24] sm:$0xe]
        %v1321 = vld [vmem:[%s832 + $0x30] sm:$0xe]
        %v1322 = vld [vmem:[%s832 + $0x3c] sm:$0xe]
        %v1323 = vld [vmem:[%s832 + $0x48] sm:$0xe]
        %v1324 = vld [vmem:[%s832 + $0x54] sm:$0xe]
        %v1349 = vrot.slane %v1317, 5
        %v1350 = vrot.slane %v1349, 4
        %v1351 = vrot.slane %v984, 5
        %v1352 = vsel %vm654, %v1350, %v1351
        %v1353 = vrot.slane %v1351, 4
        %v1354 = vrot.slane %v985, 5
        %v1355 = vsel %vm654, %v1353, %v1354
        %v1356 = vrot.slane %v1318, 5
        %v1357 = vrot.slane %v1356, 4
        %v1358 = vrot.slane %v987, 5
        %v1359 = vsel %vm654, %v1357, %v1358
        %v1360 = vrot.slane %v1358, 4
        %v1361 = vrot.slane %v988, 5
        %v1362 = vsel %vm654, %v1360, %v1361
        %v1363 = vrot.slane %v1319, 5
        %v1364 = vrot.slane %v1363, 4
        %v1365 = vrot.slane %v990, 5
        %v1366 = vsel %vm654, %v1364, %v1365
        %v1367 = vrot.slane %v1365, 4
        %v1368 = vrot.slane %v991, 5
        %v1369 = vsel %vm654, %v1367, %v1368
        %v1370 = vrot.slane %v1320, 5
        %v1371 = vrot.slane %v1370, 4
        %v1372 = vrot.slane %v993, 5
        %v1373 = vsel %vm654, %v1371, %v1372
        %v1374 = vrot.slane %v1372, 4
        %v1375 = vrot.slane %v994, 5
        %v1376 = vsel %vm654, %v1374, %v1375
        %v1377 = vrot.slane %v1321, 5
        %v1378 = vrot.slane %v1377, 4
        %v1379 = vrot.slane %v996, 5
        %v1380 = vsel %vm654, %v1378, %v1379
        %v1381 = vrot.slane %v1379, 4
        %v1382 = vrot.slane %v997, 5
        %v1383 = vsel %vm654, %v1381, %v1382
        %v1384 = vrot.slane %v1322, 5
        %v1385 = vrot.slane %v1384, 4
        %v1386 = vrot.slane %v999, 5
        %v1387 = vsel %vm654, %v1385, %v1386
        %v1388 = vrot.slane %v1386, 4
        %v1389 = vrot.slane %v1000, 5
        %v1390 = vsel %vm654, %v1388, %v1389
        %v1391 = vrot.slane %v1323, 5
        %v1392 = vrot.slane %v1391, 4
        %v1393 = vrot.slane %v1002, 5
        %v1394 = vsel %vm654, %v1392, %v1393
        %v1395 = vrot.slane %v1393, 4
        %v1396 = vrot.slane %v1003, 5
        %v1397 = vsel %vm654, %v1395, %v1396
        %v1398 = vrot.slane %v1324, 5
        %v1399 = vrot.slane %v1398, 4
        %v1400 = vrot.slane %v1005, 5
        %v1401 = vsel %vm654, %v1399, %v1400
        %v1402 = vrot.slane %v1400, 4
        %v1403 = vrot.slane %v1006, 5
        %v1404 = vsel %vm654, %v1402, %v1403
        %s1405 = scalar_lea.vmem %s1, 10
        %v1406 = vld [vmem:[%s1405] sm:$0x3]
        %v1407 = vunpack.c.l.b16 %v1352
        %v1408 = vunpack.c.l.b16 %v1355
        %v1409 = vunpack.c.l.b16 %v1359
        %v1410 = vunpack.c.l.b16 %v1362
        %v1411 = vunpack.c.l.b16 %v1366
        %v1412 = vunpack.c.l.b16 %v1369
        %v1413 = vunpack.c.l.b16 %v1373
        %v1414 = vunpack.c.l.b16 %v1376
        %v1415 = vunpack.c.l.b16 %v1380
        %v1416 = vunpack.c.l.b16 %v1383
        %v1417 = vunpack.c.l.b16 %v1387
        %v1418 = vunpack.c.l.b16 %v1390
        %v1419 = vunpack.c.l.b16 %v1394
        %v1420 = vunpack.c.l.b16 %v1397
        %v1421 = vunpack.c.l.b16 %v1401
        %v1422 = vunpack.c.l.b16 %v1404
        %v1423 = vpack.c.b16 %v1408, %v1407
        %v1424 = vpack.c.b16 %v1410, %v1409
        %v1425 = vpack.c.b16 %v1412, %v1411
        %v1426 = vpack.c.b16 %v1414, %v1413
        %v1427 = vpack.c.b16 %v1416, %v1415
        %v1428 = vpack.c.b16 %v1418, %v1417
        %v1429 = vpack.c.b16 %v1420, %v1419
        %v1430 = vpack.c.b16 %v1422, %v1421
        %v1432 = vsel %vm434, %v1423, 0
        %v1435 = vsel %vm434, %v1424, 0
        %v1438 = vsel %vm434, %v1425, 0
        %v1441 = vsel %vm434, %v1426, 0
        %v1444 = vsel %vm434, %v1427, 0
        %v1447 = vsel %vm434, %v1428, 0
        %v1450 = vsel %vm434, %v1429, 0
        %v1453 = vsel %vm434, %v1430, 0
        %v1456 = vsel %vm459, %v1406, 0
        %1458 = vmatpush.bf16.msra.mxu0 0
        %1459 = vmatpush.bf16.msra.mxu0 0
        %1460 = vmatpush.bf16.msra.mxu0 0
        %1461 = vmatpush.bf16.msra.mxu0 0
        %1462 = vmatpush.bf16.msra.mxu0 0
        %1463 = vmatpush.bf16.msra.mxu0 0
        %1464 = vmatpush.bf16.msra.mxu0 0
        %1465 = vmatpush.bf16.msra.mxu0 %v1456
        %1466 = vmatmul.bf16.gmra.mxu0 %v1432
        %v1467 = vpop.f32.mrf.mxu0
        %v1468 = vadd.f32 0.0, %v1467
        %v1469 = vpop.f32.mrf.mxu0
        %v1470 = vadd.f32 0.0, %v1469
        %1471 = vmatmul.bf16.gmra.mxu0 %v1435
        %v1472 = vpop.f32.mrf.mxu0
        %v1473 = vadd.f32 0.0, %v1472
        %v1474 = vpop.f32.mrf.mxu0
        %v1475 = vadd.f32 0.0, %v1474
        %1476 = vmatmul.bf16.gmra.mxu0 %v1438
        %v1477 = vpop.f32.mrf.mxu0
        %v1478 = vadd.f32 0.0, %v1477
        %v1479 = vpop.f32.mrf.mxu0
        %v1480 = vadd.f32 0.0, %v1479
        %1481 = vmatmul.bf16.gmra.mxu0 %v1441
        %v1482 = vpop.f32.mrf.mxu0
        %v1483 = vadd.f32 0.0, %v1482
        %v1484 = vpop.f32.mrf.mxu0
        %v1485 = vadd.f32 0.0, %v1484
        %1486 = vmatmul.bf16.gmra.mxu0 %v1444
        %v1487 = vpop.f32.mrf.mxu0
        %v1488 = vadd.f32 0.0, %v1487
        %v1489 = vpop.f32.mrf.mxu0
        %v1490 = vadd.f32 0.0, %v1489
        %1491 = vmatmul.bf16.gmra.mxu0 %v1447
        %v1492 = vpop.f32.mrf.mxu0
        %v1493 = vadd.f32 0.0, %v1492
        %v1494 = vpop.f32.mrf.mxu0
        %v1495 = vadd.f32 0.0, %v1494
        %1496 = vmatmul.bf16.gmra.mxu0 %v1450
        %v1497 = vpop.f32.mrf.mxu0
        %v1498 = vadd.f32 0.0, %v1497
        %v1499 = vpop.f32.mrf.mxu0
        %v1500 = vadd.f32 0.0, %v1499
        %1501 = vmatmul.bf16.gmra.mxu0 %v1453
        %v1502 = vpop.f32.mrf.mxu0
        %v1503 = vadd.f32 0.0, %v1502
        %v1504 = vpop.f32.mrf.mxu0
        %v1505 = vadd.f32 0.0, %v1504
        %1506 = vdwg.mxu0
        %v1507 = vadd.f32 %v1301, %v1468
        %v1508 = vadd.f32 %v1302, %v1470
        %v1509 = vadd.f32 %v1303, %v1473
        %v1510 = vadd.f32 %v1304, %v1475
        %v1511 = vadd.f32 %v1305, %v1478
        %v1512 = vadd.f32 %v1306, %v1480
        %v1513 = vadd.f32 %v1307, %v1483
        %v1514 = vadd.f32 %v1308, %v1485
        %v1515 = vadd.f32 %v1309, %v1488
        %v1516 = vadd.f32 %v1310, %v1490
        %v1517 = vadd.f32 %v1311, %v1493
        %v1518 = vadd.f32 %v1312, %v1495
        %v1519 = vadd.f32 %v1313, %v1498
        %v1520 = vadd.f32 %v1314, %v1500
        %v1521 = vadd.f32 %v1315, %v1503
        %v1522 = vadd.f32 %v1316, %v1505
        %s1523 = sadd.s32 %s184, 2
        %s1524 = smul.u32 %s1523, 3
        %s1525 = smul.addr %s1524, 4
        %s1526 = scalar_lea.vmem %s182, %s1525
        %v1527 = vld [vmem:[%s1526] sm:$0xf]
        %v1528 = vld [vmem:[%s1526 + $0x4] sm:$0xf]
        %v1529 = vld [vmem:[%s1526 + $0xc] sm:$0xf]
        %v1530 = vld [vmem:[%s1526 + $0x10] sm:$0xf]
        %v1531 = vld [vmem:[%s1526 + $0x18] sm:$0xf]
        %v1532 = vld [vmem:[%s1526 + $0x1c] sm:$0xf]
        %v1533 = vld [vmem:[%s1526 + $0x24] sm:$0xf]
        %v1534 = vld [vmem:[%s1526 + $0x28] sm:$0xf]
        %v1535 = vld [vmem:[%s1526 + $0x30] sm:$0xf]
        %v1536 = vld [vmem:[%s1526 + $0x34] sm:$0xf]
        %v1537 = vld [vmem:[%s1526 + $0x3c] sm:$0xf]
        %v1538 = vld [vmem:[%s1526 + $0x40] sm:$0xf]
        %v1539 = vld [vmem:[%s1526 + $0x48] sm:$0xf]
        %v1540 = vld [vmem:[%s1526 + $0x4c] sm:$0xf]
        %v1541 = vld [vmem:[%s1526 + $0x54] sm:$0xf]
        %v1542 = vld [vmem:[%s1526 + $0x58] sm:$0xf]
        %s1543 = scalar_lea.vmem %s1, 12
        %v1544 = vld [vmem:[%s1543] sm:$0x3]
        %v1561 = vunpack.c.l.b16 %v1527
        %v1562 = vunpack.c.l.b16 %v1528
        %v1563 = vunpack.c.l.b16 %v1529
        %v1564 = vunpack.c.l.b16 %v1530
        %v1565 = vunpack.c.l.b16 %v1531
        %v1566 = vunpack.c.l.b16 %v1532
        %v1567 = vunpack.c.l.b16 %v1533
        %v1568 = vunpack.c.l.b16 %v1534
        %v1569 = vunpack.c.l.b16 %v1535
        %v1570 = vunpack.c.l.b16 %v1536
        %v1571 = vunpack.c.l.b16 %v1537
        %v1572 = vunpack.c.l.b16 %v1538
        %v1573 = vunpack.c.l.b16 %v1539
        %v1574 = vunpack.c.l.b16 %v1540
        %v1575 = vunpack.c.l.b16 %v1541
        %v1576 = vunpack.c.l.b16 %v1542
        %v1577 = vpack.c.b16 %v1562, %v1561
        %v1578 = vpack.c.b16 %v1564, %v1563
        %v1579 = vpack.c.b16 %v1566, %v1565
        %v1580 = vpack.c.b16 %v1568, %v1567
        %v1581 = vpack.c.b16 %v1570, %v1569
        %v1582 = vpack.c.b16 %v1572, %v1571
        %v1583 = vpack.c.b16 %v1574, %v1573
        %v1584 = vpack.c.b16 %v1576, %v1575
        %v1586 = vsel %vm434, %v1577, 0
        %v1589 = vsel %vm434, %v1578, 0
        %v1592 = vsel %vm434, %v1579, 0
        %v1595 = vsel %vm434, %v1580, 0
        %v1598 = vsel %vm434, %v1581, 0
        %v1601 = vsel %vm434, %v1582, 0
        %v1604 = vsel %vm434, %v1583, 0
        %v1607 = vsel %vm434, %v1584, 0
        %v1610 = vsel %vm459, %v1544, 0
        %1612 = vmatpush.bf16.msra.mxu0 0
        %1613 = vmatpush.bf16.msra.mxu0 0
        %1614 = vmatpush.bf16.msra.mxu0 0
        %1615 = vmatpush.bf16.msra.mxu0 0
        %1616 = vmatpush.bf16.msra.mxu0 0
        %1617 = vmatpush.bf16.msra.mxu0 0
        %1618 = vmatpush.bf16.msra.mxu0 0
        %1619 = vmatpush.bf16.msra.mxu0 %v1610
        %1620 = vmatmul.bf16.gmra.mxu0 %v1586
        %v1621 = vpop.f32.mrf.mxu0
        %v1622 = vadd.f32 0.0, %v1621
        %v1623 = vpop.f32.mrf.mxu0
        %v1624 = vadd.f32 0.0, %v1623
        %1625 = vmatmul.bf16.gmra.mxu0 %v1589
        %v1626 = vpop.f32.mrf.mxu0
        %v1627 = vadd.f32 0.0, %v1626
        %v1628 = vpop.f32.mrf.mxu0
        %v1629 = vadd.f32 0.0, %v1628
        %1630 = vmatmul.bf16.gmra.mxu0 %v1592
        %v1631 = vpop.f32.mrf.mxu0
        %v1632 = vadd.f32 0.0, %v1631
        %v1633 = vpop.f32.mrf.mxu0
        %v1634 = vadd.f32 0.0, %v1633
        %1635 = vmatmul.bf16.gmra.mxu0 %v1595
        %v1636 = vpop.f32.mrf.mxu0
        %v1637 = vadd.f32 0.0, %v1636
        %v1638 = vpop.f32.mrf.mxu0
        %v1639 = vadd.f32 0.0, %v1638
        %1640 = vmatmul.bf16.gmra.mxu0 %v1598
        %v1641 = vpop.f32.mrf.mxu0
        %v1642 = vadd.f32 0.0, %v1641
        %v1643 = vpop.f32.mrf.mxu0
        %v1644 = vadd.f32 0.0, %v1643
        %1645 = vmatmul.bf16.gmra.mxu0 %v1601
        %v1646 = vpop.f32.mrf.mxu0
        %v1647 = vadd.f32 0.0, %v1646
        %v1648 = vpop.f32.mrf.mxu0
        %v1649 = vadd.f32 0.0, %v1648
        %1650 = vmatmul.bf16.gmra.mxu0 %v1604
        %v1651 = vpop.f32.mrf.mxu0
        %v1652 = vadd.f32 0.0, %v1651
        %v1653 = vpop.f32.mrf.mxu0
        %v1654 = vadd.f32 0.0, %v1653
        %1655 = vmatmul.bf16.gmra.mxu0 %v1607
        %v1656 = vpop.f32.mrf.mxu0
        %v1657 = vadd.f32 0.0, %v1656
        %v1658 = vpop.f32.mrf.mxu0
        %v1659 = vadd.f32 0.0, %v1658
        %1660 = vdwg.mxu0
        %v1661 = vadd.f32 %v1507, %v1622
        %v1662 = vadd.f32 %v1508, %v1624
        %v1663 = vadd.f32 %v1509, %v1627
        %v1664 = vadd.f32 %v1510, %v1629
        %v1665 = vadd.f32 %v1511, %v1632
        %v1666 = vadd.f32 %v1512, %v1634
        %v1667 = vadd.f32 %v1513, %v1637
        %v1668 = vadd.f32 %v1514, %v1639
        %v1669 = vadd.f32 %v1515, %v1642
        %v1670 = vadd.f32 %v1516, %v1644
        %v1671 = vadd.f32 %v1517, %v1647
        %v1672 = vadd.f32 %v1518, %v1649
        %v1673 = vadd.f32 %v1519, %v1652
        %v1674 = vadd.f32 %v1520, %v1654
        %v1675 = vadd.f32 %v1521, %v1657
        %v1676 = vadd.f32 %v1522, %v1659
        %v1677 = vld [vmem:[%s1526] sm:$0xf]
        %v1678 = vld [vmem:[%s1526 + $0x4] sm:$0xf]
        %v1679 = vld [vmem:[%s1526 + $0x8] sm:$0x1]
        %v1680 = vld [vmem:[%s1526 + $0xc] sm:$0xf]
        %v1681 = vld [vmem:[%s1526 + $0x10] sm:$0xf]
        %v1682 = vld [vmem:[%s1526 + $0x14] sm:$0x1]
        %v1683 = vld [vmem:[%s1526 + $0x18] sm:$0xf]
        %v1684 = vld [vmem:[%s1526 + $0x1c] sm:$0xf]
        %v1685 = vld [vmem:[%s1526 + $0x20] sm:$0x1]
        %v1686 = vld [vmem:[%s1526 + $0x24] sm:$0xf]
        %v1687 = vld [vmem:[%s1526 + $0x28] sm:$0xf]
        %v1688 = vld [vmem:[%s1526 + $0x2c] sm:$0x1]
        %v1689 = vld [vmem:[%s1526 + $0x30] sm:$0xf]
        %v1690 = vld [vmem:[%s1526 + $0x34] sm:$0xf]
        %v1691 = vld [vmem:[%s1526 + $0x38] sm:$0x1]
        %v1692 = vld [vmem:[%s1526 + $0x3c] sm:$0xf]
        %v1693 = vld [vmem:[%s1526 + $0x40] sm:$0xf]
        %v1694 = vld [vmem:[%s1526 + $0x44] sm:$0x1]
        %v1695 = vld [vmem:[%s1526 + $0x48] sm:$0xf]
        %v1696 = vld [vmem:[%s1526 + $0x4c] sm:$0xf]
        %v1697 = vld [vmem:[%s1526 + $0x50] sm:$0x1]
        %v1698 = vld [vmem:[%s1526 + $0x54] sm:$0xf]
        %v1699 = vld [vmem:[%s1526 + $0x58] sm:$0xf]
        %v1700 = vld [vmem:[%s1526 + $0x5c] sm:$0x1]
        %v1702 = vshrl.u32 %v1677, 16
        %v1704 = vrot.slane %v1702, 4
        %v1705 = vshll.u32 %v1677, 16
        %v1707 = vrot.slane %v1705, 5
        %v1708 = vor.u32 %v1704, %v1707
        %v1709 = vrot.slane %v1708, 4
        %v1711 = vshll.u32 %v1678, 16
        %v1713 = vrot.slane %v1711, 5
        %v1714 = vsel %vm215, %v1709, %v1713
        %v1715 = vshrl.u32 %v1678, 16
        %v1717 = vrot.slane %v1715, 4
        %v1718 = vor.u32 %v1717, %v1713
        %v1719 = vrot.slane %v1718, 4
        %v1721 = vshll.u32 %v1679, 16
        %v1723 = vrot.slane %v1721, 5
        %v1724 = vsel %vm215, %v1719, %v1723
        %v1726 = vshrl.u32 %v1680, 16
        %v1728 = vrot.slane %v1726, 4
        %v1729 = vshll.u32 %v1680, 16
        %v1731 = vrot.slane %v1729, 5
        %v1732 = vor.u32 %v1728, %v1731
        %v1733 = vrot.slane %v1732, 4
        %v1735 = vshll.u32 %v1681, 16
        %v1737 = vrot.slane %v1735, 5
        %v1738 = vsel %vm215, %v1733, %v1737
        %v1739 = vshrl.u32 %v1681, 16
        %v1741 = vrot.slane %v1739, 4
        %v1742 = vor.u32 %v1741, %v1737
        %v1743 = vrot.slane %v1742, 4
        %v1745 = vshll.u32 %v1682, 16
        %v1747 = vrot.slane %v1745, 5
        %v1748 = vsel %vm215, %v1743, %v1747
        %v1750 = vshrl.u32 %v1683, 16
        %v1752 = vrot.slane %v1750, 4
        %v1753 = vshll.u32 %v1683, 16
        %v1755 = vrot.slane %v1753, 5
        %v1756 = vor.u32 %v1752, %v1755
        %v1757 = vrot.slane %v1756, 4
        %v1759 = vshll.u32 %v1684, 16
        %v1761 = vrot.slane %v1759, 5
        %v1762 = vsel %vm215, %v1757, %v1761
        %v1763 = vshrl.u32 %v1684, 16
        %v1765 = vrot.slane %v1763, 4
        %v1766 = vor.u32 %v1765, %v1761
        %v1767 = vrot.slane %v1766, 4
        %v1769 = vshll.u32 %v1685, 16
        %v1771 = vrot.slane %v1769, 5
        %v1772 = vsel %vm215, %v1767, %v1771
        %v1774 = vshrl.u32 %v1686, 16
        %v1776 = vrot.slane %v1774, 4
        %v1777 = vshll.u32 %v1686, 16
        %v1779 = vrot.slane %v1777, 5
        %v1780 = vor.u32 %v1776, %v1779
        %v1781 = vrot.slane %v1780, 4
        %v1783 = vshll.u32 %v1687, 16
        %v1785 = vrot.slane %v1783, 5
        %v1786 = vsel %vm215, %v1781, %v1785
        %v1787 = vshrl.u32 %v1687, 16
        %v1789 = vrot.slane %v1787, 4
        %v1790 = vor.u32 %v1789, %v1785
        %v1791 = vrot.slane %v1790, 4
        %v1793 = vshll.u32 %v1688, 16
        %v1795 = vrot.slane %v1793, 5
        %v1796 = vsel %vm215, %v1791, %v1795
        %v1798 = vshrl.u32 %v1689, 16
        %v1800 = vrot.slane %v1798, 4
        %v1801 = vshll.u32 %v1689, 16
        %v1803 = vrot.slane %v1801, 5
        %v1804 = vor.u32 %v1800, %v1803
        %v1805 = vrot.slane %v1804, 4
        %v1807 = vshll.u32 %v1690, 16
        %v1809 = vrot.slane %v1807, 5
        %v1810 = vsel %vm215, %v1805, %v1809
        %v1811 = vshrl.u32 %v1690, 16
        %v1813 = vrot.slane %v1811, 4
        %v1814 = vor.u32 %v1813, %v1809
        %v1815 = vrot.slane %v1814, 4
        %v1817 = vshll.u32 %v1691, 16
        %v1819 = vrot.slane %v1817, 5
        %v1820 = vsel %vm215, %v1815, %v1819
        %v1822 = vshrl.u32 %v1692, 16
        %v1824 = vrot.slane %v1822, 4
        %v1825 = vshll.u32 %v1692, 16
        %v1827 = vrot.slane %v1825, 5
        %v1828 = vor.u32 %v1824, %v1827
        %v1829 = vrot.slane %v1828, 4
        %v1831 = vshll.u32 %v1693, 16
        %v1833 = vrot.slane %v1831, 5
        %v1834 = vsel %vm215, %v1829, %v1833
        %v1835 = vshrl.u32 %v1693, 16
        %v1837 = vrot.slane %v1835, 4
        %v1838 = vor.u32 %v1837, %v1833
        %v1839 = vrot.slane %v1838, 4
        %v1841 = vshll.u32 %v1694, 16
        %v1843 = vrot.slane %v1841, 5
        %v1844 = vsel %vm215, %v1839, %v1843
        %v1846 = vshrl.u32 %v1695, 16
        %v1848 = vrot.slane %v1846, 4
        %v1849 = vshll.u32 %v1695, 16
        %v1851 = vrot.slane %v1849, 5
        %v1852 = vor.u32 %v1848, %v1851
        %v1853 = vrot.slane %v1852, 4
        %v1855 = vshll.u32 %v1696, 16
        %v1857 = vrot.slane %v1855, 5
        %v1858 = vsel %vm215, %v1853, %v1857
        %v1859 = vshrl.u32 %v1696, 16
        %v1861 = vrot.slane %v1859, 4
        %v1862 = vor.u32 %v1861, %v1857
        %v1863 = vrot.slane %v1862, 4
        %v1865 = vshll.u32 %v1697, 16
        %v1867 = vrot.slane %v1865, 5
        %v1868 = vsel %vm215, %v1863, %v1867
        %v1870 = vshrl.u32 %v1698, 16
        %v1872 = vrot.slane %v1870, 4
        %v1873 = vshll.u32 %v1698, 16
        %v1875 = vrot.slane %v1873, 5
        %v1876 = vor.u32 %v1872, %v1875
        %v1877 = vrot.slane %v1876, 4
        %v1879 = vshll.u32 %v1699, 16
        %v1881 = vrot.slane %v1879, 5
        %v1882 = vsel %vm215, %v1877, %v1881
        %v1883 = vshrl.u32 %v1699, 16
        %v1885 = vrot.slane %v1883, 4
        %v1886 = vor.u32 %v1885, %v1881
        %v1887 = vrot.slane %v1886, 4
        %v1889 = vshll.u32 %v1700, 16
        %v1891 = vrot.slane %v1889, 5
        %v1892 = vsel %vm215, %v1887, %v1891
        %s1893 = scalar_lea.vmem %s1, 14
        %v1894 = vld [vmem:[%s1893] sm:$0x3]
        %v1895 = vunpack.c.l.b16 %v1714
        %v1896 = vunpack.c.l.b16 %v1724
        %v1897 = vunpack.c.l.b16 %v1738
        %v1898 = vunpack.c.l.b16 %v1748
        %v1899 = vunpack.c.l.b16 %v1762
        %v1900 = vunpack.c.l.b16 %v1772
        %v1901 = vunpack.c.l.b16 %v1786
        %v1902 = vunpack.c.l.b16 %v1796
        %v1903 = vunpack.c.l.b16 %v1810
        %v1904 = vunpack.c.l.b16 %v1820
        %v1905 = vunpack.c.l.b16 %v1834
        %v1906 = vunpack.c.l.b16 %v1844
        %v1907 = vunpack.c.l.b16 %v1858
        %v1908 = vunpack.c.l.b16 %v1868
        %v1909 = vunpack.c.l.b16 %v1882
        %v1910 = vunpack.c.l.b16 %v1892
        %v1911 = vpack.c.b16 %v1896, %v1895
        %v1912 = vpack.c.b16 %v1898, %v1897
        %v1913 = vpack.c.b16 %v1900, %v1899
        %v1914 = vpack.c.b16 %v1902, %v1901
        %v1915 = vpack.c.b16 %v1904, %v1903
        %v1916 = vpack.c.b16 %v1906, %v1905
        %v1917 = vpack.c.b16 %v1908, %v1907
        %v1918 = vpack.c.b16 %v1910, %v1909
        %v1920 = vsel %vm434, %v1911, 0
        %v1923 = vsel %vm434, %v1912, 0
        %v1926 = vsel %vm434, %v1913, 0
        %v1929 = vsel %vm434, %v1914, 0
        %v1932 = vsel %vm434, %v1915, 0
        %v1935 = vsel %vm434, %v1916, 0
        %v1938 = vsel %vm434, %v1917, 0
        %v1941 = vsel %vm434, %v1918, 0
        %v1944 = vsel %vm459, %v1894, 0
        %1946 = vmatpush.bf16.msra.mxu0 0
        %1947 = vmatpush.bf16.msra.mxu0 0
        %1948 = vmatpush.bf16.msra.mxu0 0
        %1949 = vmatpush.bf16.msra.mxu0 0
        %1950 = vmatpush.bf16.msra.mxu0 0
        %1951 = vmatpush.bf16.msra.mxu0 0
        %1952 = vmatpush.bf16.msra.mxu0 0
        %1953 = vmatpush.bf16.msra.mxu0 %v1944
        %1954 = vmatmul.bf16.gmra.mxu0 %v1920
        %v1955 = vpop.f32.mrf.mxu0
        %v1956 = vadd.f32 0.0, %v1955
        %v1957 = vpop.f32.mrf.mxu0
        %v1958 = vadd.f32 0.0, %v1957
        %1959 = vmatmul.bf16.gmra.mxu0 %v1923
        %v1960 = vpop.f32.mrf.mxu0
        %v1961 = vadd.f32 0.0, %v1960
        %v1962 = vpop.f32.mrf.mxu0
        %v1963 = vadd.f32 0.0, %v1962
        %1964 = vmatmul.bf16.gmra.mxu0 %v1926
        %v1965 = vpop.f32.mrf.mxu0
        %v1966 = vadd.f32 0.0, %v1965
        %v1967 = vpop.f32.mrf.mxu0
        %v1968 = vadd.f32 0.0, %v1967
        %1969 = vmatmul.bf16.gmra.mxu0 %v1929
        %v1970 = vpop.f32.mrf.mxu0
        %v1971 = vadd.f32 0.0, %v1970
        %v1972 = vpop.f32.mrf.mxu0
        %v1973 = vadd.f32 0.0, %v1972
        %1974 = vmatmul.bf16.gmra.mxu0 %v1932
        %v1975 = vpop.f32.mrf.mxu0
        %v1976 = vadd.f32 0.0, %v1975
        %v1977 = vpop.f32.mrf.mxu0
        %v1978 = vadd.f32 0.0, %v1977
        %1979 = vmatmul.bf16.gmra.mxu0 %v1935
        %v1980 = vpop.f32.mrf.mxu0
        %v1981 = vadd.f32 0.0, %v1980
        %v1982 = vpop.f32.mrf.mxu0
        %v1983 = vadd.f32 0.0, %v1982
        %1984 = vmatmul.bf16.gmra.mxu0 %v1938
        %v1985 = vpop.f32.mrf.mxu0
        %v1986 = vadd.f32 0.0, %v1985
        %v1987 = vpop.f32.mrf.mxu0
        %v1988 = vadd.f32 0.0, %v1987
        %1989 = vmatmul.bf16.gmra.mxu0 %v1941
        %v1990 = vpop.f32.mrf.mxu0
        %v1991 = vadd.f32 0.0, %v1990
        %v1992 = vpop.f32.mrf.mxu0
        %v1993 = vadd.f32 0.0, %v1992
        %1994 = vdwg.mxu0
        %v1995 = vadd.f32 %v1661, %v1956
        %v1996 = vadd.f32 %v1662, %v1958
        %v1997 = vadd.f32 %v1663, %v1961
        %v1998 = vadd.f32 %v1664, %v1963
        %v1999 = vadd.f32 %v1665, %v1966
        %v2000 = vadd.f32 %v1666, %v1968
        %v2001 = vadd.f32 %v1667, %v1971
        %v2002 = vadd.f32 %v1668, %v1973
        %v2003 = vadd.f32 %v1669, %v1976
        %v2004 = vadd.f32 %v1670, %v1978
        %v2005 = vadd.f32 %v1671, %v1981
        %v2006 = vadd.f32 %v1672, %v1983
        %v2007 = vadd.f32 %v1673, %v1986
        %v2008 = vadd.f32 %v1674, %v1988
        %v2009 = vadd.f32 %v1675, %v1991
        %v2010 = vadd.f32 %v1676, %v1993
        %v2011 = vld [vmem:[%s1526] sm:$0xe]
        %v2012 = vld [vmem:[%s1526 + $0xc] sm:$0xe]
        %v2013 = vld [vmem:[%s1526 + $0x18] sm:$0xe]
        %v2014 = vld [vmem:[%s1526 + $0x24] sm:$0xe]
        %v2015 = vld [vmem:[%s1526 + $0x30] sm:$0xe]
        %v2016 = vld [vmem:[%s1526 + $0x3c] sm:$0xe]
        %v2017 = vld [vmem:[%s1526 + $0x48] sm:$0xe]
        %v2018 = vld [vmem:[%s1526 + $0x54] sm:$0xe]
        %v2043 = vrot.slane %v2011, 5
        %v2044 = vrot.slane %v2043, 4
        %v2045 = vrot.slane %v1678, 5
        %v2046 = vsel %vm654, %v2044, %v2045
        %v2047 = vrot.slane %v2045, 4
        %v2048 = vrot.slane %v1679, 5
        %v2049 = vsel %vm654, %v2047, %v2048
        %v2050 = vrot.slane %v2012, 5
        %v2051 = vrot.slane %v2050, 4
        %v2052 = vrot.slane %v1681, 5
        %v2053 = vsel %vm654, %v2051, %v2052
        %v2054 = vrot.slane %v2052, 4
        %v2055 = vrot.slane %v1682, 5
        %v2056 = vsel %vm654, %v2054, %v2055
        %v2057 = vrot.slane %v2013, 5
        %v2058 = vrot.slane %v2057, 4
        %v2059 = vrot.slane %v1684, 5
        %v2060 = vsel %vm654, %v2058, %v2059
        %v2061 = vrot.slane %v2059, 4
        %v2062 = vrot.slane %v1685, 5
        %v2063 = vsel %vm654, %v2061, %v2062
        %v2064 = vrot.slane %v2014, 5
        %v2065 = vrot.slane %v2064, 4
        %v2066 = vrot.slane %v1687, 5
        %v2067 = vsel %vm654, %v2065, %v2066
        %v2068 = vrot.slane %v2066, 4
        %v2069 = vrot.slane %v1688, 5
        %v2070 = vsel %vm654, %v2068, %v2069
        %v2071 = vrot.slane %v2015, 5
        %v2072 = vrot.slane %v2071, 4
        %v2073 = vrot.slane %v1690, 5
        %v2074 = vsel %vm654, %v2072, %v2073
        %v2075 = vrot.slane %v2073, 4
        %v2076 = vrot.slane %v1691, 5
        %v2077 = vsel %vm654, %v2075, %v2076
        %v2078 = vrot.slane %v2016, 5
        %v2079 = vrot.slane %v2078, 4
        %v2080 = vrot.slane %v1693, 5
        %v2081 = vsel %vm654, %v2079, %v2080
        %v2082 = vrot.slane %v2080, 4
        %v2083 = vrot.slane %v1694, 5
        %v2084 = vsel %vm654, %v2082, %v2083
        %v2085 = vrot.slane %v2017, 5
        %v2086 = vrot.slane %v2085, 4
        %v2087 = vrot.slane %v1696, 5
        %v2088 = vsel %vm654, %v2086, %v2087
        %v2089 = vrot.slane %v2087, 4
        %v2090 = vrot.slane %v1697, 5
        %v2091 = vsel %vm654, %v2089, %v2090
        %v2092 = vrot.slane %v2018, 5
        %v2093 = vrot.slane %v2092, 4
        %v2094 = vrot.slane %v1699, 5
        %v2095 = vsel %vm654, %v2093, %v2094
        %v2096 = vrot.slane %v2094, 4
        %v2097 = vrot.slane %v1700, 5
        %v2098 = vsel %vm654, %v2096, %v2097
        %s2099 = scalar_lea.vmem %s1, 16
        %v2100 = vld [vmem:[%s2099] sm:$0x3]
        %v2101 = vunpack.c.l.b16 %v2046
        %v2102 = vunpack.c.l.b16 %v2049
        %v2103 = vunpack.c.l.b16 %v2053
        %v2104 = vunpack.c.l.b16 %v2056
        %v2105 = vunpack.c.l.b16 %v2060
        %v2106 = vunpack.c.l.b16 %v2063
        %v2107 = vunpack.c.l.b16 %v2067
        %v2108 = vunpack.c.l.b16 %v2070
        %v2109 = vunpack.c.l.b16 %v2074
        %v2110 = vunpack.c.l.b16 %v2077
        %v2111 = vunpack.c.l.b16 %v2081
        %v2112 = vunpack.c.l.b16 %v2084
        %v2113 = vunpack.c.l.b16 %v2088
        %v2114 = vunpack.c.l.b16 %v2091
        %v2115 = vunpack.c.l.b16 %v2095
        %v2116 = vunpack.c.l.b16 %v2098
        %v2117 = vpack.c.b16 %v2102, %v2101
        %v2118 = vpack.c.b16 %v2104, %v2103
        %v2119 = vpack.c.b16 %v2106, %v2105
        %v2120 = vpack.c.b16 %v2108, %v2107
        %v2121 = vpack.c.b16 %v2110, %v2109
        %v2122 = vpack.c.b16 %v2112, %v2111
        %v2123 = vpack.c.b16 %v2114, %v2113
        %v2124 = vpack.c.b16 %v2116, %v2115
        %v2126 = vsel %vm434, %v2117, 0
        %v2129 = vsel %vm434, %v2118, 0
        %v2132 = vsel %vm434, %v2119, 0
        %v2135 = vsel %vm434, %v2120, 0
        %v2138 = vsel %vm434, %v2121, 0
        %v2141 = vsel %vm434, %v2122, 0
        %v2144 = vsel %vm434, %v2123, 0
        %v2147 = vsel %vm434, %v2124, 0
        %v2150 = vsel %vm459, %v2100, 0
        %2152 = vmatpush.bf16.msra.mxu0 0
        %2153 = vmatpush.bf16.msra.mxu0 0
        %2154 = vmatpush.bf16.msra.mxu0 0
        %2155 = vmatpush.bf16.msra.mxu0 0
        %2156 = vmatpush.bf16.msra.mxu0 0
        %2157 = vmatpush.bf16.msra.mxu0 0
        %2158 = vmatpush.bf16.msra.mxu0 0
        %2159 = vmatpush.bf16.msra.mxu0 %v2150
        %2160 = vmatmul.bf16.gmra.mxu0 %v2126
        %v2161 = vpop.f32.mrf.mxu0
        %v2162 = vadd.f32 0.0, %v2161
        %v2163 = vpop.f32.mrf.mxu0
        %v2164 = vadd.f32 0.0, %v2163
        %2165 = vmatmul.bf16.gmra.mxu0 %v2129
        %v2166 = vpop.f32.mrf.mxu0
        %v2167 = vadd.f32 0.0, %v2166
        %v2168 = vpop.f32.mrf.mxu0
        %v2169 = vadd.f32 0.0, %v2168
        %2170 = vmatmul.bf16.gmra.mxu0 %v2132
        %v2171 = vpop.f32.mrf.mxu0
        %v2172 = vadd.f32 0.0, %v2171
        %v2173 = vpop.f32.mrf.mxu0
        %v2174 = vadd.f32 0.0, %v2173
        %2175 = vmatmul.bf16.gmra.mxu0 %v2135
        %v2176 = vpop.f32.mrf.mxu0
        %v2177 = vadd.f32 0.0, %v2176
        %v2178 = vpop.f32.mrf.mxu0
        %v2179 = vadd.f32 0.0, %v2178
        %2180 = vmatmul.bf16.gmra.mxu0 %v2138
        %v2181 = vpop.f32.mrf.mxu0
        %v2182 = vadd.f32 0.0, %v2181
        %v2183 = vpop.f32.mrf.mxu0
        %v2184 = vadd.f32 0.0, %v2183
        %2185 = vmatmul.bf16.gmra.mxu0 %v2141
        %v2186 = vpop.f32.mrf.mxu0
        %v2187 = vadd.f32 0.0, %v2186
        %v2188 = vpop.f32.mrf.mxu0
        %v2189 = vadd.f32 0.0, %v2188
        %2190 = vmatmul.bf16.gmra.mxu0 %v2144
        %v2191 = vpop.f32.mrf.mxu0
        %v2192 = vadd.f32 0.0, %v2191
        %v2193 = vpop.f32.mrf.mxu0
        %v2194 = vadd.f32 0.0, %v2193
        %2195 = vmatmul.bf16.gmra.mxu0 %v2147
        %v2196 = vpop.f32.mrf.mxu0
        %v2197 = vadd.f32 0.0, %v2196
        %v2198 = vpop.f32.mrf.mxu0
        %v2199 = vadd.f32 0.0, %v2198
        %2200 = vdwg.mxu0
        %v2201 = vadd.f32 %v1995, %v2162
        %v2202 = vadd.f32 %v1996, %v2164
        %v2203 = vadd.f32 %v1997, %v2167
        %v2204 = vadd.f32 %v1998, %v2169
        %v2205 = vadd.f32 %v1999, %v2172
        %v2206 = vadd.f32 %v2000, %v2174
        %v2207 = vadd.f32 %v2001, %v2177
        %v2208 = vadd.f32 %v2002, %v2179
        %v2209 = vadd.f32 %v2003, %v2182
        %v2210 = vadd.f32 %v2004, %v2184
        %v2211 = vadd.f32 %v2005, %v2187
        %v2212 = vadd.f32 %v2006, %v2189
        %v2213 = vadd.f32 %v2007, %v2192
        %v2214 = vadd.f32 %v2008, %v2194
        %v2215 = vadd.f32 %v2009, %v2197
        %v2216 = vadd.f32 %v2010, %v2199
        %v2217 = vld [vmem:[%s2] sm:$0x1]
        %v2219 = vperm.slane %v2217, 0
        %v2221 = vadd.f32 %v2201, %v2219
        %v2222 = vadd.f32 %v2202, %v2219
        %v2223 = vadd.f32 %v2203, %v2219
        %v2224 = vadd.f32 %v2204, %v2219
        %v2225 = vadd.f32 %v2205, %v2219
        %v2226 = vadd.f32 %v2206, %v2219
        %v2227 = vadd.f32 %v2207, %v2219
        %v2228 = vadd.f32 %v2208, %v2219
        %v2229 = vadd.f32 %v2209, %v2219
        %v2230 = vadd.f32 %v2210, %v2219
        %v2231 = vadd.f32 %v2211, %v2219
        %v2232 = vadd.f32 %v2212, %v2219
        %v2233 = vadd.f32 %v2213, %v2219
        %v2234 = vadd.f32 %v2214, %v2219
        %v2235 = vadd.f32 %v2215, %v2219
        %v2236 = vadd.f32 %v2216, %v2219
        %v2237 = vmax.f32 %v2221, 0.0
        %v2238 = vmax.f32 %v2222, 0.0
        %v2239 = vmax.f32 %v2223, 0.0
        %v2240 = vmax.f32 %v2224, 0.0
        %v2241 = vmax.f32 %v2225, 0.0
        %v2242 = vmax.f32 %v2226, 0.0
        %v2243 = vmax.f32 %v2227, 0.0
        %v2244 = vmax.f32 %v2228, 0.0
        %v2245 = vmax.f32 %v2229, 0.0
        %v2246 = vmax.f32 %v2230, 0.0
        %v2247 = vmax.f32 %v2231, 0.0
        %v2248 = vmax.f32 %v2232, 0.0
        %v2249 = vmax.f32 %v2233, 0.0
        %v2250 = vmax.f32 %v2234, 0.0
        %v2251 = vmax.f32 %v2235, 0.0
        %v2252 = vmax.f32 %v2236, 0.0
        %2253 = vxpose.xlu0.b32.start [1/16] %v2237, 128
        %2254 = vxpose.xlu0.b32.cont [2/16] %v2238, 128
        %2255 = vxpose.xlu0.b32.cont [3/16] %v2239, 128
        %2256 = vxpose.xlu0.b32.cont [4/16] %v2240, 128
        %2257 = vxpose.xlu0.b32.cont [5/16] %v2241, 128
        %2258 = vxpose.xlu0.b32.cont [6/16] %v2242, 128
        %2259 = vxpose.xlu0.b32.cont [7/16] %v2243, 128
        %2260 = vxpose.xlu0.b32.cont [8/16] %v2244, 128
        %2261 = vxpose.xlu0.b32.cont [9/16] %v2245, 128
        %2262 = vxpose.xlu0.b32.cont [10/16] %v2246, 128
        %2263 = vxpose.xlu0.b32.cont [11/16] %v2247, 128
        %2264 = vxpose.xlu0.b32.cont [12/16] %v2248, 128
        %2265 = vxpose.xlu0.b32.cont [13/16] %v2249, 128
        %2266 = vxpose.xlu0.b32.cont [14/16] %v2250, 128
        %2267 = vxpose.xlu0.b32.cont [15/16] %v2251, 128
        %2268 = vxpose.xlu0.b32.end [16/16] %v2252, 128
        %v2269 = vpop.trf.xlu0
        %v2270 = vpop.trf.xlu0
        %v2271 = vpop.trf.xlu0
        %v2272 = vpop.trf.xlu0
        %v2273 = vpop.trf.xlu0
        %v2274 = vpop.trf.xlu0
        %v2275 = vpop.trf.xlu0
        %v2276 = vpop.trf.xlu0
        %v2277 = vpop.trf.xlu0
        %v2278 = vpop.trf.xlu0
        %v2279 = vpop.trf.xlu0
        %v2280 = vpop.trf.xlu0
        %v2281 = vpop.trf.xlu0
        %v2282 = vpop.trf.xlu0
        %v2283 = vpop.trf.xlu0
        %v2284 = vpop.trf.xlu0
        %2285 = vst [vmem:[%s177] sm:$0xff] %v2269
        %s2286 = sand.u32 %s107, 1
        %s2287 = scalar_lea.sflag [#allocation3], %s2286
        %s2288 = sand.u32 %s107, 1
        %s2289 = smul.addr %s2288, 8
        %s2290 = scalar_lea.vmem [#allocation2], %s2289
        // Predicated region
        $region33: #{tpu_custom_call.1} parent=31 // pred_check
          %p2291 = pneg %p117
        $region34: #{tpu_custom_call.1} parent=31 // pred_check_branch
          %2293 = sbr.rel (%p2291) target = $region36
        $region35: #{tpu_custom_call.1} parent=31 // pred_region
          %2295 = vsyncadd %s2287, 0
          %s2296 = smul.addr %s21, 2
          %s2297 = sadd.s32 %s22, %s2296
          %s2298 = smul.addr %s2297, 8
          %s2299 = scalar_lea.hbm %s3, %s2298
          %s2301 = sshll.u32 %s2290, 4
          %s2302 = int_to_ptr.vmem [resolvable:$true] %s2301
          %s2303 = sshll.u32 %s2299, 4
          %s2304 = int_to_ptr.hbm [resolvable:$true] %s2303
          %2306 = dma.vmem_to_hbm [thread:$0]  %s2302, 128, %s2304, %s2287
        $region36: #{tpu_custom_call.1} parent=31 // pred_fallthru
          _
      $region32: #{tpu_custom_call.1} parent=5 // pred_fallthru
        _
      %p2307 = scmp.le.s32.totalorder 2, %s12
      // Predicated region
      $region37: #{tpu_custom_call.1} parent=5 // pred_check
        %p2308 = pneg %p2307
      $region38: #{tpu_custom_call.1} parent=5 // pred_check_branch
        %2310 = sbr.rel (%p2308) target = $region40
      $region39: #{tpu_custom_call.1} parent=5 // pred_region
        %s2311 = ssub.s32 %s12, 2
        // Predicated region
        $region41: #{tpu_custom_call.1} parent=39 // pred_check
          %p2312 = pneg %p123
        $region42: #{tpu_custom_call.1} parent=39 // pred_check_branch
          %2314 = sbr.rel (%p2312) target = $region44
        $region43: #{tpu_custom_call.1} parent=39 // pred_region
          %s2315 = sand.u32 %s108, 1
          %s2316 = scalar_lea.sflag [#allocation3], %s2315
          %s2317 = sand.u32 %s108, 1
          %s2318 = smul.addr %s2317, 8
          %s2319 = scalar_lea.vmem [#allocation2], %s2318
          %2321 = dma.done %s2316, 128
        $region44: #{tpu_custom_call.1} parent=39 // pred_fallthru
          _
      $region40: #{tpu_custom_call.1} parent=5 // pred_fallthru
        _
    $region6: #{tpu_custom_call.1} parent=1 // loop_footer
      %s16 = sadd.s32 1, %s12
    $region7: #{tpu_custom_call.1} parent=1 // loop_footer_branch
      %11 = sbr.rel target = $region3
    $region8: #{tpu_custom_call.1} parent=1 // loop_exit
      _
    %2322 = vsyncpa [#allocation3], 1
    %s2323 = scalar_lea.sflag [#allocation3], 1
    %2324 = vsyncpa %s2323, 1

</llo_original>
